<compile_context>
chip_gen: v7x
topology: tpu7x:2x2x1
jax: 0.10.0
libtpu: 0.0.40
codegen_flags: <defaults>
</compile_context>

<pallas_src>
import jax
import jax.numpy as jnp
from jax.experimental import pallas as pl
from jax.experimental.pallas import tpu as pltpu


def _back_kernel(left_ref, right_ref, mt_ref, rb_ref, out_l_ref, out_r_ref):
    # left_ref/right_ref : (1, 2C, P) blocks, one batch element per grid step
    # mt_ref             : (C, C) bf16 = Wk^T @ Wq   (fused projection matrix)
    # rb_ref             : (C, 1) f32  = Wk^T @ bq   (fused projection bias)
    C = mt_ref.shape[0]
    mt = mt_ref[...]                               # (C, C) bf16
    rb = rb_ref[...]                               # (C, 1) f32

    def one_direction(q_ref, r_ref, out_ref):
        qo = q_ref[0, :C, :]                       # (C, P) query  "origin" half
        qt = q_ref[0, C:, :]                       # (C, P) query  "trans"  half
        ro = r_ref[0, :C, :]                       # (C, P) reference "origin"

        qo_b = qo.astype(jnp.bfloat16)
        ro_b = ro.astype(jnp.bfloat16)

        # --- CoAttentionLayer (algebraically fused 1x1 projections) ---------
        # g[c, p1] = (Wk^T Wq qo)[c, p1] + (Wk^T bq)[c]
        g = jnp.dot(mt, qo_b, preferred_element_type=jnp.float32) + rb   # (C, P)
        # logits already transposed: att_t[p2, p1] = sum_c ro[c, p2] * g[c, p1]
        att_t = jax.lax.dot_general(
            ro_b, g.astype(jnp.bfloat16),
            (((0,), (0,)), ((), ())),
            preferred_element_type=jnp.float32)                          # (P2, P1)

        # softmax over reference positions p2 (axis 0, sublane reduction)
        m = jnp.max(att_t, axis=0, keepdims=True)                        # (1, P1)
        e = jnp.exp(att_t - m)
        denom = jnp.sum(e, axis=0, keepdims=True)                        # (1, P1)
        attn = e * pl.reciprocal(denom, approx=True)                     # (P2, P1)

        # attended[c, p1] = sum_p2 ro[c, p2] * attn[p2, p1]  (natural A·B form)
        attended = jnp.dot(ro_b, attn.astype(jnp.bfloat16),
                           preferred_element_type=jnp.float32)           # (C, P1)

        # --- HomoLayer (f32 VPU path, channel-axis softmax) -----------------
        corr = qo - qt
        cm = jnp.max(corr, axis=0, keepdims=True)
        ce = jnp.exp(corr - cm)
        cs = jnp.sum(ce, axis=0, keepdims=True)
        homo = ce * pl.reciprocal(cs, approx=True) * qt                  # (C, P)

        # --- fused concat: [query-origin | attended + homo] ------------------
        out_ref[0, :C, :] = qo
        out_ref[0, C:, :] = (attended + homo).astype(out_ref.dtype)

    one_direction(left_ref, right_ref, out_l_ref)   # left queries, right ref
    one_direction(right_ref, left_ref, out_r_ref)   # right queries, left ref


def back_layers(left_features, right_features, params):
    """left/right: (B, 2C, H, W) -> (left_out, right_out), each (B, 2C, H, W)."""
    B, C2, H, W = left_features.shape
    C = C2 // 2
    P = H * W

    wq, bq, wk = params["wq"], params["bq"], params["wk"]
    # Fuse the Ch = C//8 projections.  The softmax over p2 is invariant to
    # terms constant in p2, so bk and bq·bk drop out entirely.
    mt = jnp.dot(wk.T, wq).astype(jnp.bfloat16)    # (C, C)  = Wk^T Wq
    rb = jnp.dot(wk.T, bq).reshape(C, 1)           # (C, 1)  = Wk^T bq

    left_flat = left_features.reshape(B, C2, P)    # free reshapes (no copy)
    right_flat = right_features.reshape(B, C2, P)

    feat_spec = pl.BlockSpec((1, C2, P), lambda b: (b, 0, 0))
    out_l, out_r = pl.pallas_call(
        _back_kernel,
        out_shape=(jax.ShapeDtypeStruct((B, C2, P), jnp.float32),
                   jax.ShapeDtypeStruct((B, C2, P), jnp.float32)),
        grid_spec=pltpu.PrefetchScalarGridSpec(
            num_scalar_prefetch=0,
            grid=(B,),
            in_specs=[feat_spec, feat_spec,
                      pl.BlockSpec((C, C), lambda b: (0, 0)),
                      pl.BlockSpec((C, 1), lambda b: (0, 0))],
            out_specs=(feat_spec, feat_spec),
        ),
        compiler_params=pltpu.CompilerParams(dimension_semantics=("parallel",)),
    )(left_flat, right_flat, mt, rb)

    return out_l.reshape(B, C2, H, W), out_r.reshape(B, C2, H, W)


# ---------------------- pure-JAX reference (for verification) ----------------
def _ref_co_attention(qf, rf, wq, bq, wk, bk):
    B, C, H, W = qf.shape
    P = H * W
    Q = jnp.einsum('oc,bchw->bohw', wq, qf) + bq[None, :, None, None]
    K = jnp.einsum('oc,bchw->bohw', wk, rf) + bk[None, :, None, None]
    V = rf.reshape(B, C, P)
    att = jnp.einsum('bcij,bckl->bijkl', Q, K).reshape(B, H, W, P)
    att = jax.nn.softmax(att, axis=3)
    return jnp.einsum('bijp,bcp->bcij', att, V)


def _ref_homo(qo, qt):
    corr = jax.nn.softmax(qo - qt, axis=1)
    return corr * qt


def _ref_get_both(query_features, reference_features, params):
    C = query_features.shape[1] // 2
    qo = query_features[:, :C]
    qt = query_features[:, C:]
    ro = reference_features[:, :C]
    cross = _ref_co_attention(qo, ro, params["wq"], params["bq"],
                              params["wk"], params["bk"])
    homo = _ref_homo(qo, qt)
    return jnp.concatenate([qo, cross + homo], axis=1)


if __name__ == "__main__":
    # Module semantics: feature channels = 2 * input_dim, hidden = input_dim // 8.
    input_dim = 32               # C (half of the feature channels)
    hidden = input_dim // 8      # Ch = 4
    B, H, W = 2, 16, 16          # P = H*W = 256 >= 128 -> lane-dense stores

    key = jax.random.PRNGKey(0)
    k_left, k_right, k_wq, k_bq, k_wk, k_bk = jax.random.split(key, 6)

    left = jax.random.normal(k_left, (B, 2 * input_dim, H, W), jnp.float32)
    right = jax.random.normal(k_right, (B, 2 * input_dim, H, W), jnp.float32)

    params = {
        "wq": jax.random.normal(k_wq, (hidden, input_dim), jnp.float32) * 0.05,
        "bq": jax.random.normal(k_bq, (hidden,), jnp.float32) * 0.05,
        "wk": jax.random.normal(k_wk, (hidden, input_dim), jnp.float32) * 0.05,
        "bk": jax.random.normal(k_bk, (hidden,), jnp.float32) * 0.05,
    }

    fwd = jax.jit(back_layers)
    left_out, right_out = jax.block_until_ready(fwd(left, right, params))

    # verify against the pure-JAX f32 reference (bf16 MXU operands + approx
    # reciprocal in the kernel -> tolerance slightly looser than pure f32)
    ref_left = _ref_get_both(left, right, params)
    ref_right = _ref_get_both(right, left, params)
    assert left_out.shape == (B, 2 * input_dim, H, W)
    assert right_out.shape == (B, 2 * input_dim, H, W)
    assert jnp.allclose(left_out, ref_left, atol=2e-2, rtol=2e-2)
    assert jnp.allclose(right_out, ref_right, atol=2e-2, rtol=2e-2)

    print("KERNEL_OK")
</pallas_src>

<mosaic_0001>
module attributes {stable_mosaic.version = 11 : i64} {
  func.func @_back_kernel(%arg0: i32, %arg1: memref<1x64x256xf32, #tpu.memory_space<vmem>>, %arg2: memref<1x64x256xf32, #tpu.memory_space<vmem>>, %arg3: memref<32x32xbf16, #tpu.memory_space<vmem>>, %arg4: memref<32x1xf32, #tpu.memory_space<vmem>>, %arg5: memref<1x64x256xf32, #tpu.memory_space<vmem>>, %arg6: memref<1x64x256xf32, #tpu.memory_space<vmem>>) attributes {dimension_semantics = [#tpu.dimension_semantics<parallel>], iteration_bounds = array<i64: 2>, scalar_prefetch = 0 : i64, scratch_operands = 0 : i64, tpu.core_type = #tpu.core_type<tc>, window_params = [{transform_indices = @transform_0, window_bounds = array<i64: 1, 64, 256>}, {transform_indices = @transform_1, window_bounds = array<i64: 1, 64, 256>}, {pipeline_mode = #tpu.pipeline_mode<synchronous>, transform_indices = @transform_2, window_bounds = array<i64: 32, 32>}, {pipeline_mode = #tpu.pipeline_mode<synchronous>, transform_indices = @transform_3, window_bounds = array<i64: 32, 1>}, {transform_indices = @transform_4, window_bounds = array<i64: 1, 64, 256>}, {transform_indices = @transform_5, window_bounds = array<i64: 1, 64, 256>}]} {
    %c0 = arith.constant 0 : index
    %c0_0 = arith.constant 0 : index
    %0 = vector.load %arg3[%c0, %c0_0] : memref<32x32xbf16, #tpu.memory_space<vmem>>, vector<32x32xbf16>
    %c0_1 = arith.constant 0 : index
    %c0_2 = arith.constant 0 : index
    %1 = vector.load %arg4[%c0_1, %c0_2] : memref<32x1xf32, #tpu.memory_space<vmem>>, vector<32x1xf32>
    %c0_3 = arith.constant 0 : index
    %c0_4 = arith.constant 0 : index
    %c0_5 = arith.constant 0 : index
    %2 = vector.load %arg1[%c0_3, %c0_4, %c0_5] : memref<1x64x256xf32, #tpu.memory_space<vmem>>, vector<1x32x256xf32>
    %3 = vector.shape_cast %2 : vector<1x32x256xf32> to vector<32x256xf32>
    %c0_6 = arith.constant 0 : index
    %c32 = arith.constant 32 : index
    %c0_7 = arith.constant 0 : index
    %4 = vector.load %arg1[%c0_6, %c32, %c0_7] : memref<1x64x256xf32, #tpu.memory_space<vmem>>, vector<1x32x256xf32>
    %5 = vector.shape_cast %4 : vector<1x32x256xf32> to vector<32x256xf32>
    %c0_8 = arith.constant 0 : index
    %c0_9 = arith.constant 0 : index
    %c0_10 = arith.constant 0 : index
    %6 = vector.load %arg2[%c0_8, %c0_9, %c0_10] : memref<1x64x256xf32, #tpu.memory_space<vmem>>, vector<1x32x256xf32>
    %7 = vector.shape_cast %6 : vector<1x32x256xf32> to vector<32x256xf32>
    %8 = arith.truncf %3 : vector<32x256xf32> to vector<32x256xbf16>
    %9 = arith.truncf %7 : vector<32x256xf32> to vector<32x256xbf16>
    %cst = arith.constant dense<0.000000e+00> : vector<32x256xf32>
    %10 = tpu.matmul %0, %8, %cst {dimension_numbers = #tpu.dot_dimension_numbers<[1], [0], [0], [1], [0, 0, 1, 1], [], []>} : vector<32x32xbf16>, vector<32x256xbf16>, vector<32x256xf32> -> vector<32x256xf32>
    %11 = vector.broadcast %1 : vector<32x1xf32> to vector<32x256xf32>
    %12 = arith.addf %10, %11 : vector<32x256xf32>
    %13 = arith.truncf %12 : vector<32x256xf32> to vector<32x256xbf16>
    %cst_11 = arith.constant dense<0.000000e+00> : vector<256x256xf32>
    %14 = tpu.matmul %9, %13, %cst_11 {dimension_numbers = #tpu.dot_dimension_numbers<[0], [0], [1], [1], [0, 1, 1, 1], [], []>} : vector<32x256xbf16>, vector<32x256xbf16>, vector<256x256xf32> -> vector<256x256xf32>
    %cst_12 = arith.constant dense<0xFF800000> : vector<256xf32>
    %15 = vector.multi_reduction <maximumf>, %14, %cst_12 [0] : vector<256x256xf32> to vector<256xf32>
    %16 = vector.shape_cast %15 : vector<256xf32> to vector<1x256xf32>
    %17 = vector.broadcast %16 : vector<1x256xf32> to vector<256x256xf32>
    %18 = arith.subf %14, %17 : vector<256x256xf32>
    %19 = math.exp %18 : vector<256x256xf32>
    %cst_13 = arith.constant dense<0.000000e+00> : vector<256xf32>
    %20 = vector.multi_reduction <add>, %19, %cst_13 [0] : vector<256x256xf32> to vector<256xf32>
    %21 = vector.shape_cast %20 : vector<256xf32> to vector<1x256xf32>
    %22 = tpu.reciprocal %21 {approx = true} : vector<1x256xf32> -> vector<1x256xf32>
    %23 = vector.broadcast %22 : vector<1x256xf32> to vector<256x256xf32>
    %24 = arith.mulf %19, %23 : vector<256x256xf32>
    %25 = arith.truncf %24 : vector<256x256xf32> to vector<256x256xbf16>
    %cst_14 = arith.constant dense<0.000000e+00> : vector<32x256xf32>
    %26 = tpu.matmul %9, %25, %cst_14 {dimension_numbers = #tpu.dot_dimension_numbers<[1], [0], [0], [1], [0, 0, 1, 1], [], []>} : vector<32x256xbf16>, vector<256x256xbf16>, vector<32x256xf32> -> vector<32x256xf32>
    %27 = arith.subf %3, %5 : vector<32x256xf32>
    %cst_15 = arith.constant dense<0xFF800000> : vector<256xf32>
    %28 = vector.multi_reduction <maximumf>, %27, %cst_15 [0] : vector<32x256xf32> to vector<256xf32>
    %29 = vector.shape_cast %28 : vector<256xf32> to vector<1x256xf32>
    %30 = vector.broadcast %29 : vector<1x256xf32> to vector<32x256xf32>
    %31 = arith.subf %27, %30 : vector<32x256xf32>
    %32 = math.exp %31 : vector<32x256xf32>
    %cst_16 = arith.constant dense<0.000000e+00> : vector<256xf32>
    %33 = vector.multi_reduction <add>, %32, %cst_16 [0] : vector<32x256xf32> to vector<256xf32>
    %34 = vector.shape_cast %33 : vector<256xf32> to vector<1x256xf32>
    %35 = tpu.reciprocal %34 {approx = true} : vector<1x256xf32> -> vector<1x256xf32>
    %36 = vector.broadcast %35 : vector<1x256xf32> to vector<32x256xf32>
    %37 = arith.mulf %32, %36 : vector<32x256xf32>
    %38 = arith.mulf %37, %5 : vector<32x256xf32>
    %c0_17 = arith.constant 0 : index
    %c0_18 = arith.constant 0 : index
    %c0_19 = arith.constant 0 : index
    %39 = vector.load %arg5[%c0_17, %c0_18, %c0_19] : memref<1x64x256xf32, #tpu.memory_space<vmem>>, vector<1x32x256xf32>
    %40 = vector.shape_cast %39 : vector<1x32x256xf32> to vector<32x256xf32>
    %41 = vector.shape_cast %3 : vector<32x256xf32> to vector<1x32x256xf32>
    tpu.vector_store %arg5[%c0_17, %c0_18, %c0_19], %41 {strides = array<i32>} : memref<1x64x256xf32, #tpu.memory_space<vmem>>, vector<1x32x256xf32>,
    %42 = arith.addf %26, %38 : vector<32x256xf32>
    %c0_20 = arith.constant 0 : index
    %c32_21 = arith.constant 32 : index
    %c0_22 = arith.constant 0 : index
    %43 = vector.load %arg5[%c0_20, %c32_21, %c0_22] : memref<1x64x256xf32, #tpu.memory_space<vmem>>, vector<1x32x256xf32>
    %44 = vector.shape_cast %43 : vector<1x32x256xf32> to vector<32x256xf32>
    %45 = vector.shape_cast %42 : vector<32x256xf32> to vector<1x32x256xf32>
    tpu.vector_store %arg5[%c0_20, %c32_21, %c0_22], %45 {strides = array<i32>} : memref<1x64x256xf32, #tpu.memory_space<vmem>>, vector<1x32x256xf32>,
    %c0_23 = arith.constant 0 : index
    %c0_24 = arith.constant 0 : index
    %c0_25 = arith.constant 0 : index
    %46 = vector.load %arg2[%c0_23, %c0_24, %c0_25] : memref<1x64x256xf32, #tpu.memory_space<vmem>>, vector<1x32x256xf32>
    %47 = vector.shape_cast %46 : vector<1x32x256xf32> to vector<32x256xf32>
    %c0_26 = arith.constant 0 : index
    %c32_27 = arith.constant 32 : index
    %c0_28 = arith.constant 0 : index
    %48 = vector.load %arg2[%c0_26, %c32_27, %c0_28] : memref<1x64x256xf32, #tpu.memory_space<vmem>>, vector<1x32x256xf32>
    %49 = vector.shape_cast %48 : vector<1x32x256xf32> to vector<32x256xf32>
    %c0_29 = arith.constant 0 : index
    %c0_30 = arith.constant 0 : index
    %c0_31 = arith.constant 0 : index
    %50 = vector.load %arg1[%c0_29, %c0_30, %c0_31] : memref<1x64x256xf32, #tpu.memory_space<vmem>>, vector<1x32x256xf32>
    %51 = vector.shape_cast %50 : vector<1x32x256xf32> to vector<32x256xf32>
    %52 = arith.truncf %47 : vector<32x256xf32> to vector<32x256xbf16>
    %53 = arith.truncf %51 : vector<32x256xf32> to vector<32x256xbf16>
    %cst_32 = arith.constant dense<0.000000e+00> : vector<32x256xf32>
    %54 = tpu.matmul %0, %52, %cst_32 {dimension_numbers = #tpu.dot_dimension_numbers<[1], [0], [0], [1], [0, 0, 1, 1], [], []>} : vector<32x32xbf16>, vector<32x256xbf16>, vector<32x256xf32> -> vector<32x256xf32>
    %55 = vector.broadcast %1 : vector<32x1xf32> to vector<32x256xf32>
    %56 = arith.addf %54, %55 : vector<32x256xf32>
    %57 = arith.truncf %56 : vector<32x256xf32> to vector<32x256xbf16>
    %cst_33 = arith.constant dense<0.000000e+00> : vector<256x256xf32>
    %58 = tpu.matmul %53, %57, %cst_33 {dimension_numbers = #tpu.dot_dimension_numbers<[0], [0], [1], [1], [0, 1, 1, 1], [], []>} : vector<32x256xbf16>, vector<32x256xbf16>, vector<256x256xf32> -> vector<256x256xf32>
    %cst_34 = arith.constant dense<0xFF800000> : vector<256xf32>
    %59 = vector.multi_reduction <maximumf>, %58, %cst_34 [0] : vector<256x256xf32> to vector<256xf32>
    %60 = vector.shape_cast %59 : vector<256xf32> to vector<1x256xf32>
    %61 = vector.broadcast %60 : vector<1x256xf32> to vector<256x256xf32>
    %62 = arith.subf %58, %61 : vector<256x256xf32>
    %63 = math.exp %62 : vector<256x256xf32>
    %cst_35 = arith.constant dense<0.000000e+00> : vector<256xf32>
    %64 = vector.multi_reduction <add>, %63, %cst_35 [0] : vector<256x256xf32> to vector<256xf32>
    %65 = vector.shape_cast %64 : vector<256xf32> to vector<1x256xf32>
    %66 = tpu.reciprocal %65 {approx = true} : vector<1x256xf32> -> vector<1x256xf32>
    %67 = vector.broadcast %66 : vector<1x256xf32> to vector<256x256xf32>
    %68 = arith.mulf %63, %67 : vector<256x256xf32>
    %69 = arith.truncf %68 : vector<256x256xf32> to vector<256x256xbf16>
    %cst_36 = arith.constant dense<0.000000e+00> : vector<32x256xf32>
    %70 = tpu.matmul %53, %69, %cst_36 {dimension_numbers = #tpu.dot_dimension_numbers<[1], [0], [0], [1], [0, 0, 1, 1], [], []>} : vector<32x256xbf16>, vector<256x256xbf16>, vector<32x256xf32> -> vector<32x256xf32>
    %71 = arith.subf %47, %49 : vector<32x256xf32>
    %cst_37 = arith.constant dense<0xFF800000> : vector<256xf32>
    %72 = vector.multi_reduction <maximumf>, %71, %cst_37 [0] : vector<32x256xf32> to vector<256xf32>
    %73 = vector.shape_cast %72 : vector<256xf32> to vector<1x256xf32>
    %74 = vector.broadcast %73 : vector<1x256xf32> to vector<32x256xf32>
    %75 = arith.subf %71, %74 : vector<32x256xf32>
    %76 = math.exp %75 : vector<32x256xf32>
    %cst_38 = arith.constant dense<0.000000e+00> : vector<256xf32>
    %77 = vector.multi_reduction <add>, %76, %cst_38 [0] : vector<32x256xf32> to vector<256xf32>
    %78 = vector.shape_cast %77 : vector<256xf32> to vector<1x256xf32>
    %79 = tpu.reciprocal %78 {approx = true} : vector<1x256xf32> -> vector<1x256xf32>
    %80 = vector.broadcast %79 : vector<1x256xf32> to vector<32x256xf32>
    %81 = arith.mulf %76, %80 : vector<32x256xf32>
    %82 = arith.mulf %81, %49 : vector<32x256xf32>
    %c0_39 = arith.constant 0 : index
    %c0_40 = arith.constant 0 : index
    %c0_41 = arith.constant 0 : index
    %83 = vector.load %arg6[%c0_39, %c0_40, %c0_41] : memref<1x64x256xf32, #tpu.memory_space<vmem>>, vector<1x32x256xf32>
    %84 = vector.shape_cast %83 : vector<1x32x256xf32> to vector<32x256xf32>
    %85 = vector.shape_cast %47 : vector<32x256xf32> to vector<1x32x256xf32>
    tpu.vector_store %arg6[%c0_39, %c0_40, %c0_41], %85 {strides = array<i32>} : memref<1x64x256xf32, #tpu.memory_space<vmem>>, vector<1x32x256xf32>,
    %86 = arith.addf %70, %82 : vector<32x256xf32>
    %c0_42 = arith.constant 0 : index
    %c32_43 = arith.constant 32 : index
    %c0_44 = arith.constant 0 : index
    %87 = vector.load %arg6[%c0_42, %c32_43, %c0_44] : memref<1x64x256xf32, #tpu.memory_space<vmem>>, vector<1x32x256xf32>
    %88 = vector.shape_cast %87 : vector<1x32x256xf32> to vector<32x256xf32>
    %89 = vector.shape_cast %86 : vector<32x256xf32> to vector<1x32x256xf32>
    tpu.vector_store %arg6[%c0_42, %c32_43, %c0_44], %89 {strides = array<i32>} : memref<1x64x256xf32, #tpu.memory_space<vmem>>, vector<1x32x256xf32>,
    return
  }
  func.func @transform_0(%arg0: i32) -> (i32, i32, i32) {
    %c0_i32 = arith.constant 0 : i32
    %c0_i32_0 = arith.constant 0 : i32
    %c0_i32_1 = arith.constant 0 : i32
    return %arg0, %c0_i32, %c0_i32_0 : i32, i32, i32
  }
  func.func @transform_1(%arg0: i32) -> (i32, i32, i32) {
    %c0_i32 = arith.constant 0 : i32
    %c0_i32_0 = arith.constant 0 : i32
    %c0_i32_1 = arith.constant 0 : i32
    return %arg0, %c0_i32, %c0_i32_0 : i32, i32, i32
  }
  func.func @transform_2(%arg0: i32) -> (i32, i32) {
    %c0_i32 = arith.constant 0 : i32
    %c0_i32_0 = arith.constant 0 : i32
    %c0_i32_1 = arith.constant 0 : i32
    return %c0_i32, %c0_i32_0 : i32, i32
  }
  func.func @transform_3(%arg0: i32) -> (i32, i32) {
    %c0_i32 = arith.constant 0 : i32
    %c0_i32_0 = arith.constant 0 : i32
    %c0_i32_1 = arith.constant 0 : i32
    return %c0_i32, %c0_i32_0 : i32, i32
  }
  func.func @transform_4(%arg0: i32) -> (i32, i32, i32) {
    %c0_i32 = arith.constant 0 : i32
    %c0_i32_0 = arith.constant 0 : i32
    %c0_i32_1 = arith.constant 0 : i32
    return %arg0, %c0_i32, %c0_i32_0 : i32, i32, i32
  }
  func.func @transform_5(%arg0: i32) -> (i32, i32, i32) {
    %c0_i32 = arith.constant 0 : i32
    %c0_i32_0 = arith.constant 0 : i32
    %c0_i32_1 = arith.constant 0 : i32
    return %arg0, %c0_i32, %c0_i32_0 : i32, i32, i32
  }
}

</mosaic_0001>

<llo_original>
// kernel: back_layers.1
$region0: #{back_layers.1}
  #allocation0 [shape = 'u32[]', space=smem, size = 0x4, offset = 0x4, fixed_abs, tag = 'smem constant byte address 0x4 - core index']
  #allocation1 [shape = 'u32[144,128]{1,0:T(1,128)}', space=vmem, size = 0x12000, scoped, tag = 'internal scratch']
  %s0 = inlined_call_operand.vmem [shape: f32[2,64,256], index: 0, kind: input, shape index: {}]
  %s1 = inlined_call_operand.vmem [shape: f32[2,64,256], index: 1, kind: input, shape index: {}]
  %s2 = inlined_call_operand.vmem [shape: bf16[32,32], index: 2, kind: input, shape index: {}]
  %s3 = inlined_call_operand.vmem [shape: f32[32,1], index: 3, kind: input, shape index: {}]
  %s4 = inlined_call_operand.vmem [shape: f32[2,64,256], index: 4, kind: output, shape index: {0}]
  %s5 = inlined_call_operand.vmem [shape: f32[2,64,256], index: 5, kind: output, shape index: {1}]
  %6 = xla_tuple %s4, %s5
  %s7 = sld [smem:[#allocation0]]
  $region57: #{back_layers.1} parent=0
    _
  %s9 = ssub.s32 1, %s7
  %s10 = scalar_select 0, %s9, %s7
  loop: start=0, step=1, limit=4
  $region2: #{back_layers.1} parent=0 // loop_pre_header
    _
  $region3: #{back_layers.1} parent=0 // loop_header
    %s12 = sphi 0, %s16
    %p13 = scmp.ge.s32.totalorder %s12, 4
    %s22 = sphi 0, %s24
    %s25 = sphi 0, %s22
    %s26 = sphi 0, %s25
    %s42 = sphi 0, %s26
    %s48 = sphi 0, %s50
    %s51 = sphi 0, %s48
    %s52 = sphi 0, %s51
    %s68 = sphi 0, %s52
    %s72 = sphi 0, %s72
    %s74 = sphi 0, %s72
    %s75 = sphi 0, %s74
    %s89 = sphi 0, %s75
    %s93 = sphi 0, %s93
    %s95 = sphi 0, %s93
    %s96 = sphi 0, %s95
    %s110 = sphi 0, %s96
    %s116 = sphi 0, %s118
    %s119 = sphi 0, %s116
    %s120 = sphi 0, %s119
    %s136 = sphi 0, %s120
    %s142 = sphi 0, %s144
    %s145 = sphi 0, %s142
    %s146 = sphi 0, %s145
    %s162 = sphi 0, %s146
  $region4: #{back_layers.1} parent=0 // loop_header_branch
    %15 = sbr.rel (%p13) target = $region8
  $region5: #{back_layers.1} parent=0 // loop_body
    %s17 = ssub.s32 %s12, 1
    %s18 = ssub.s32 %s12, 2
    %s19 = sadd.s32 %s12, 1
    %s20 = ssub.s32 %s12, %s19
    %p21 = scmp.eq.s32.totalorder %s20, 0
    %s23 = sadd.s32 %s22, 1
    %s24 = scalar_select %p21, %s22, %s23
    %p27 = pneg %p21
    %p28 = scmp.eq.s32.totalorder %s12, 1
    %p29 = por %p27, %p28
    %p30 = scmp.ne.s32.totalorder %s22, %s25
    %p31 = scmp.eq.s32.totalorder %s12, 0
    %p32 = por %p30, %p31
    %p33 = scmp.ne.s32.totalorder %s22, %s25
    %p34 = scmp.eq.s32.totalorder %s17, 1
    %p35 = por %p33, %p34
    %p36 = scmp.ne.s32.totalorder %s25, %s26
    %p37 = scmp.eq.s32.totalorder %s17, 0
    %p38 = por %p36, %p37
    %p39 = scmp.ne.s32.totalorder %s25, %s26
    %p40 = scmp.eq.s32.totalorder %s18, 1
    %p41 = por %p39, %p40
    %p43 = scmp.ne.s32.totalorder %s26, %s42
    %p44 = scmp.eq.s32.totalorder %s18, 0
    %p45 = por %p43, %p44
    %s46 = ssub.s32 %s12, %s19
    %p47 = scmp.eq.s32.totalorder %s46, 0
    %s49 = sadd.s32 %s48, 1
    %s50 = scalar_select %p47, %s48, %s49
    %p53 = pneg %p47
    %p54 = scmp.eq.s32.totalorder %s12, 1
    %p55 = por %p53, %p54
    %p56 = scmp.ne.s32.totalorder %s48, %s51
    %p57 = scmp.eq.s32.totalorder %s12, 0
    %p58 = por %p56, %p57
    %p59 = scmp.ne.s32.totalorder %s48, %s51
    %p60 = scmp.eq.s32.totalorder %s17, 1
    %p61 = por %p59, %p60
    %p62 = scmp.ne.s32.totalorder %s51, %s52
    %p63 = scmp.eq.s32.totalorder %s17, 0
    %p64 = por %p62, %p63
    %p65 = scmp.ne.s32.totalorder %s51, %s52
    %p66 = scmp.eq.s32.totalorder %s18, 1
    %p67 = por %p65, %p66
    %p69 = scmp.ne.s32.totalorder %s52, %s68
    %p70 = scmp.eq.s32.totalorder %s18, 0
    %p71 = por %p69, %p70
    %s73 = sadd.s32 %s72, 1
    %p76 = scmp.eq.s32.totalorder %s12, 1
    %p77 = scmp.ne.s32.totalorder %s72, %s74
    %p78 = scmp.eq.s32.totalorder %s12, 0
    %p79 = por %p77, %p78
    %p80 = scmp.ne.s32.totalorder %s72, %s74
    %p81 = scmp.eq.s32.totalorder %s17, 1
    %p82 = por %p80, %p81
    %p83 = scmp.ne.s32.totalorder %s74, %s75
    %p84 = scmp.eq.s32.totalorder %s17, 0
    %p85 = por %p83, %p84
    %p86 = scmp.ne.s32.totalorder %s74, %s75
    %p87 = scmp.eq.s32.totalorder %s18, 1
    %p88 = por %p86, %p87
    %p90 = scmp.ne.s32.totalorder %s75, %s89
    %p91 = scmp.eq.s32.totalorder %s18, 0
    %p92 = por %p90, %p91
    %s94 = sadd.s32 %s93, 1
    %p97 = scmp.eq.s32.totalorder %s12, 1
    %p98 = scmp.ne.s32.totalorder %s93, %s95
    %p99 = scmp.eq.s32.totalorder %s12, 0
    %p100 = por %p98, %p99
    %p101 = scmp.ne.s32.totalorder %s93, %s95
    %p102 = scmp.eq.s32.totalorder %s17, 1
    %p103 = por %p101, %p102
    %p104 = scmp.ne.s32.totalorder %s95, %s96
    %p105 = scmp.eq.s32.totalorder %s17, 0
    %p106 = por %p104, %p105
    %p107 = scmp.ne.s32.totalorder %s95, %s96
    %p108 = scmp.eq.s32.totalorder %s18, 1
    %p109 = por %p107, %p108
    %p111 = scmp.ne.s32.totalorder %s96, %s110
    %p112 = scmp.eq.s32.totalorder %s18, 0
    %p113 = por %p111, %p112
    %s114 = ssub.s32 %s12, %s19
    %p115 = scmp.eq.s32.totalorder %s114, 0
    %s117 = sadd.s32 %s116, 1
    %s118 = scalar_select %p115, %s116, %s117
    %p121 = pneg %p115
    %p122 = scmp.eq.s32.totalorder %s12, 1
    %p123 = por %p121, %p122
    %p124 = scmp.ne.s32.totalorder %s116, %s119
    %p125 = scmp.eq.s32.totalorder %s12, 0
    %p126 = por %p124, %p125
    %p127 = scmp.ne.s32.totalorder %s116, %s119
    %p128 = scmp.eq.s32.totalorder %s17, 1
    %p129 = por %p127, %p128
    %p130 = scmp.ne.s32.totalorder %s119, %s120
    %p131 = scmp.eq.s32.totalorder %s17, 0
    %p132 = por %p130, %p131
    %p133 = scmp.ne.s32.totalorder %s119, %s120
    %p134 = scmp.eq.s32.totalorder %s18, 1
    %p135 = por %p133, %p134
    %p137 = scmp.ne.s32.totalorder %s120, %s136
    %p138 = scmp.eq.s32.totalorder %s18, 0
    %p139 = por %p137, %p138
    %s140 = ssub.s32 %s12, %s19
    %p141 = scmp.eq.s32.totalorder %s140, 0
    %s143 = sadd.s32 %s142, 1
    %s144 = scalar_select %p141, %s142, %s143
    %p147 = pneg %p141
    %p148 = scmp.eq.s32.totalorder %s12, 1
    %p149 = por %p147, %p148
    %p150 = scmp.ne.s32.totalorder %s142, %s145
    %p151 = scmp.eq.s32.totalorder %s12, 0
    %p152 = por %p150, %p151
    %p153 = scmp.ne.s32.totalorder %s142, %s145
    %p154 = scmp.eq.s32.totalorder %s17, 1
    %p155 = por %p153, %p154
    %p156 = scmp.ne.s32.totalorder %s145, %s146
    %p157 = scmp.eq.s32.totalorder %s17, 0
    %p158 = por %p156, %p157
    %p159 = scmp.ne.s32.totalorder %s145, %s146
    %p160 = scmp.eq.s32.totalorder %s18, 1
    %p161 = por %p159, %p160
    %p163 = scmp.ne.s32.totalorder %s146, %s162
    %p164 = scmp.eq.s32.totalorder %s18, 0
    %p165 = por %p163, %p164
    %p166 = scmp.le.s32.totalorder 1, %s12
    %p167 = scmp.lt.s32.totalorder %s12, 3
    %p168 = pnand %p166, %p167
    %p169 = pneg %p168
    // Predicated region
    $region9: #{back_layers.1} parent=5 // pred_check
      _
    $region10: #{back_layers.1} parent=5 // pred_check_branch
      %171 = sbr.rel (%p168) target = $region12
    $region11: #{back_layers.1} parent=5 // pred_region
      %s172 = ssub.s32 %s12, 1
      // Predicated region
      $region13: #{back_layers.1} parent=11 // pred_check
        %p173 = pneg %p85
      $region14: #{back_layers.1} parent=11 // pred_check_branch
        %175 = sbr.rel (%p173) target = $region16
      $region15: #{back_layers.1} parent=11 // pred_region
        _
      $region16: #{back_layers.1} parent=11 // pred_fallthru
        _
      // Predicated region
      $region17: #{back_layers.1} parent=11 // pred_check
        %p176 = pneg %p106
      $region18: #{back_layers.1} parent=11 // pred_check_branch
        %178 = sbr.rel (%p176) target = $region20
      $region19: #{back_layers.1} parent=11 // pred_region
        _
      $region20: #{back_layers.1} parent=11 // pred_fallthru
        _
    $region12: #{back_layers.1} parent=5 // pred_fallthru
      _
    %p179 = scmp.lt.s32.totalorder %s12, 2
    // Predicated region
    $region21: #{back_layers.1} parent=5 // pred_check
      %p180 = pneg %p179
    $region22: #{back_layers.1} parent=5 // pred_check_branch
      %182 = sbr.rel (%p180) target = $region24
    $region23: #{back_layers.1} parent=5 // pred_region
      // Predicated region
      $region25: #{back_layers.1} parent=23 // pred_check
        %p183 = pneg %p32
      $region26: #{back_layers.1} parent=23 // pred_check_branch
        %185 = sbr.rel (%p183) target = $region28
      $region27: #{back_layers.1} parent=23 // pred_region
        %p186 = scmp.lt.s32.totalorder %s12, 1
        %s187 = scalar_select %p186, %s12, 1
        %s188 = smul.addr %s187, 16
        %s189 = smul.addr %s188, 8
        %s190 = scalar_lea.vmem %s0, %s189
      $region28: #{back_layers.1} parent=23 // pred_fallthru
        _
      // Predicated region
      $region29: #{back_layers.1} parent=23 // pred_check
        %p191 = pneg %p58
      $region30: #{back_layers.1} parent=23 // pred_check_branch
        %193 = sbr.rel (%p191) target = $region32
      $region31: #{back_layers.1} parent=23 // pred_region
        %p194 = scmp.lt.s32.totalorder %s12, 1
        %s195 = scalar_select %p194, %s12, 1
        %s196 = smul.addr %s195, 16
        %s197 = smul.addr %s196, 8
        %s198 = scalar_lea.vmem %s1, %s197
      $region32: #{back_layers.1} parent=23 // pred_fallthru
        _
    $region24: #{back_layers.1} parent=5 // pred_fallthru
      _
    %p199 = scmp.le.s32.totalorder 1, %s12
    %p200 = scmp.lt.s32.totalorder %s12, 3
    %p201 = pnand %p199, %p200
    %p202 = pneg %p201
    // Predicated region
    $region33: #{back_layers.1} parent=5 // pred_check
      _
    $region34: #{back_layers.1} parent=5 // pred_check_branch
      %204 = sbr.rel (%p201) target = $region36
    $region35: #{back_layers.1} parent=5 // pred_region
      %s205 = ssub.s32 %s12, 1
      %p206 = scmp.lt.s32.totalorder %s17, 1
      %s207 = scalar_select %p206, %s17, 1
      %s208 = smul.addr %s207, 16
      %s209 = smul.addr %s208, 8
      %s210 = scalar_lea.vmem %s0, %s209
      %p211 = pneg %p38
      %p212 = pneg %p35
      %p213 = scmp.lt.s32.totalorder %s17, 1
      %s214 = scalar_select %p213, %s17, 1
      %s215 = smul.addr %s214, 16
      %s216 = smul.addr %s215, 8
      %s217 = scalar_lea.vmem %s1, %s216
      %p218 = pneg %p64
      %p219 = pneg %p61
      %p220 = pneg %p85
      %p221 = pneg %p82
      %p222 = pneg %p106
      %p223 = pneg %p103
      %p224 = pneg %p132
      %p225 = pneg %p129
      %p226 = scmp.lt.s32.totalorder %s17, 1
      %s227 = scalar_select %p226, %s17, 1
      %s228 = smul.addr %s227, 16
      %s229 = smul.addr %s228, 8
      %s230 = scalar_lea.vmem %s4, %s229
      %p231 = pneg %p158
      %p232 = pneg %p155
      %p233 = scmp.lt.s32.totalorder %s17, 1
      %s234 = scalar_select %p233, %s17, 1
      %s235 = smul.addr %s234, 16
      %s236 = smul.addr %s235, 8
      %s237 = scalar_lea.vmem %s5, %s236
      %p238 = scmp.lt.s32.totalorder %s17, 1
      %s239 = scalar_select %p238, %s17, 1
      %s240 = smul.addr %s239, 16
      %s241 = smul.addr %s240, 8
      %s242 = scalar_lea.vmem %s0, %s241
      %p243 = scmp.lt.s32.totalorder %s17, 1
      %s244 = scalar_select %p243, %s17, 1
      %s245 = smul.addr %s244, 16
      %s246 = smul.addr %s245, 8
      %s247 = scalar_lea.vmem %s1, %s246
      %p248 = scmp.lt.s32.totalorder %s17, 1
      %s249 = scalar_select %p248, %s17, 1
      %s250 = smul.addr %s249, 16
      %s251 = smul.addr %s250, 8
      %s252 = scalar_lea.vmem %s4, %s251
      %p253 = scmp.lt.s32.totalorder %s17, 1
      %s254 = scalar_select %p253, %s17, 1
      %s255 = smul.addr %s254, 16
      %s256 = smul.addr %s255, 8
      %s257 = scalar_lea.vmem %s5, %s256
      %v259 = vld [vmem:[%s2] sm:$0xf]
      %v260 = vld [vmem:[%s2 + $0x4] sm:$0xf]
      %v261 = vld [vmem:[%s2 + $0x8] sm:$0xf]
      %v262 = vld [vmem:[%s2 + $0xc] sm:$0xf]
      %v263 = vld [vmem:[%s3] sm:$0xff]
      %v264 = vld [vmem:[%s3 + $0x8] sm:$0xff]
      %v265 = vld [vmem:[%s3 + $0x10] sm:$0xff]
      %v266 = vld [vmem:[%s3 + $0x18] sm:$0xff]
      %v267 = vld [vmem:[%s242] sm:$0xff]
      %v268 = vld [vmem:[%s242 + $0x8] sm:$0xff]
      %v269 = vld [vmem:[%s242 + $0x10] sm:$0xff]
      %v270 = vld [vmem:[%s242 + $0x18] sm:$0xff]
      %v271 = vld [vmem:[%s242 + $0x20] sm:$0xff]
      %v272 = vld [vmem:[%s242 + $0x28] sm:$0xff]
      %v273 = vld [vmem:[%s242 + $0x30] sm:$0xff]
      %v274 = vld [vmem:[%s242 + $0x38] sm:$0xff]
      %v275 = vld [vmem:[%s242 + $0x40] sm:$0xff]
      %v276 = vld [vmem:[%s242 + $0x48] sm:$0xff]
      %v277 = vld [vmem:[%s242 + $0x50] sm:$0xff]
      %v278 = vld [vmem:[%s242 + $0x58] sm:$0xff]
      %v279 = vld [vmem:[%s242 + $0x60] sm:$0xff]
      %v280 = vld [vmem:[%s242 + $0x68] sm:$0xff]
      %v281 = vld [vmem:[%s242 + $0x70] sm:$0xff]
      %v282 = vld [vmem:[%s242 + $0x78] sm:$0xff]
      %v283 = vld [vmem:[%s247] sm:$0xff]
      %v284 = vld [vmem:[%s247 + $0x8] sm:$0xff]
      %v285 = vld [vmem:[%s247 + $0x10] sm:$0xff]
      %v286 = vld [vmem:[%s247 + $0x18] sm:$0xff]
      %v287 = vld [vmem:[%s247 + $0x20] sm:$0xff]
      %v288 = vld [vmem:[%s247 + $0x28] sm:$0xff]
      %v289 = vld [vmem:[%s247 + $0x30] sm:$0xff]
      %v290 = vld [vmem:[%s247 + $0x38] sm:$0xff]
      %v291 = vpack.c.bf16 %v269, %v267
      %v292 = vpack.c.bf16 %v270, %v268
      %v293 = vpack.c.bf16 %v273, %v271
      %v294 = vpack.c.bf16 %v274, %v272
      %v295 = vpack.c.bf16 %v285, %v283
      %v296 = vpack.c.bf16 %v286, %v284
      %v297 = vpack.c.bf16 %v289, %v287
      %v298 = vpack.c.bf16 %v290, %v288
      %300 = vset.pattern.permute.xlu0 0
      %301 = vperm.xlu0 %300, %v263
      %v302 = vpop.permute.xlu0 %301
      %305 = vset.pattern.permute.xlu0 0
      %306 = vperm.xlu0 %305, %v264
      %v307 = vpop.permute.xlu0 %306
      %310 = vset.pattern.permute.xlu0 0
      %311 = vperm.xlu0 %310, %v265
      %v312 = vpop.permute.xlu0 %311
      %315 = vset.pattern.permute.xlu0 0
      %316 = vperm.xlu0 %315, %v266
      %v317 = vpop.permute.xlu0 %316
      %v323 = vunpack.c.l.b16 %v259
      %v324 = vunpack.c.l.b16 %v260
      %v325 = vunpack.c.l.b16 %v261
      %v326 = vunpack.c.l.b16 %v262
      %v327 = vpack.c.b16 %v324, %v323
      %v328 = vpack.c.b16 %v326, %v325
      %vm329 = vcmask 261120
      %v331 = vsel %vm329, %v327, 0
      %v334 = vsel %vm329, %v328, 0
      %336 = vmatprep.subr.bf16.mxu0 %v292
      %337 = vmatpush1.bf16.msra.mxu0 %v291
      %338 = vmatprep.subr.bf16.mxu0 %v294
      %339 = vmatpush1.bf16.msra.mxu0 %v293
      %340 = vmatprep.subr.bf16.mxu0 0
      %341 = vmatpush1.bf16.msra.mxu0 0
      %342 = vmatprep.subr.bf16.mxu0 0
      %343 = vmatpush1.bf16.msra.mxu0 0
      %344 = vmatprep.subr.bf16.mxu0 0
      %345 = vmatpush1.bf16.msra.mxu0 0
      %346 = vmatprep.subr.bf16.mxu0 0
      %347 = vmatpush1.bf16.msra.mxu0 0
      %348 = vmatprep.subr.bf16.mxu0 0
      %349 = vmatpush1.bf16.msra.mxu0 0
      %350 = vmatprep.subr.bf16.mxu0 0
      %351 = vmatpush1.bf16.msra.mxu0 0
      %352 = vmatprep.subr.bf16.mxu0 0
      %353 = vmatpush1.bf16.msra.mxu0 0
      %354 = vmatprep.subr.bf16.mxu0 0
      %355 = vmatpush1.bf16.msra.mxu0 0
      %356 = vmatprep.subr.bf16.mxu0 0
      %357 = vmatpush1.bf16.msra.mxu0 0
      %358 = vmatprep.subr.bf16.mxu0 0
      %359 = vmatpush1.bf16.msra.mxu0 0
      %360 = vmatprep.subr.bf16.mxu0 0
      %361 = vmatpush1.bf16.msra.mxu0 0
      %362 = vmatprep.subr.bf16.mxu0 0
      %363 = vmatpush1.bf16.msra.mxu0 0
      %364 = vmatprep.subr.bf16.mxu0 0
      %365 = vmatpush1.bf16.msra.mxu0 0
      %366 = vmatprep.subr.bf16.mxu0 0
      %367 = vmatpush1.bf16.msra.mxu0 0
      %368 = vmatprep.mubr.bf16.mxu0 0
      %369 = vmatmul.mubr.bf16.gmra.mrb[0].mxu0 %v331
      %v370 = vpop.f32.mrb[0].mxu0
      %v371 = vadd.f32 %v302, %v370
      %v372 = vpop.f32.mrb[0].mxu0
      %v373 = vadd.f32 %v302, %v372
      %v374 = vpop.f32.mrb[0].mxu0
      %v375 = vadd.f32 %v307, %v374
      %v376 = vpop.f32.mrb[0].mxu0
      %v377 = vadd.f32 %v307, %v376
      %378 = vmatprep.mubr.bf16.mxu0 0
      %379 = vmatmul.mubr.bf16.gmra.mrb[0].mxu0 %v334
      %v380 = vpop.f32.mrb[0].mxu0
      %v381 = vadd.f32 %v312, %v380
      %v382 = vpop.f32.mrb[0].mxu0
      %v383 = vadd.f32 %v312, %v382
      %v384 = vpop.f32.mrb[0].mxu0
      %v385 = vadd.f32 %v317, %v384
      %v386 = vpop.f32.mrb[0].mxu0
      %v387 = vadd.f32 %v317, %v386
      %388 = vdwg.mxu0
      %v389 = vpack.c.bf16 %v375, %v371
      %v390 = vpack.c.bf16 %v377, %v373
      %v391 = vpack.c.bf16 %v385, %v381
      %v392 = vpack.c.bf16 %v387, %v383
      %393 = vxpose.xlu0.c.b16.start [1/8] %v295, 128
      %394 = vxpose.xlu0.c.b16.cont [2/8] %v297, 128
      %395 = vxpose.xlu0.c.b16.cont [3/8] 0, 128
      %396 = vxpose.xlu0.c.b16.cont [4/8] 0, 128
      %397 = vxpose.xlu0.c.b16.cont [5/8] 0, 128
      %398 = vxpose.xlu0.c.b16.cont [6/8] 0, 128
      %399 = vxpose.xlu0.c.b16.cont [7/8] 0, 128
      %400 = vxpose.xlu0.c.b16.end [8/8] 0, 128
      %v401 = vpop.trf.xlu0
      %v402 = vpop.trf.xlu0
      %v403 = vpop.trf.xlu0
      %v404 = vpop.trf.xlu0
      %v405 = vpop.trf.xlu0
      %v406 = vpop.trf.xlu0
      %v407 = vpop.trf.xlu0
      %v408 = vpop.trf.xlu0
      %409 = vxpose.xlu0.c.b16.start [1/8] %v296, 128
      %410 = vxpose.xlu0.c.b16.cont [2/8] %v298, 128
      %411 = vxpose.xlu0.c.b16.cont [3/8] 0, 128
      %412 = vxpose.xlu0.c.b16.cont [4/8] 0, 128
      %413 = vxpose.xlu0.c.b16.cont [5/8] 0, 128
      %414 = vxpose.xlu0.c.b16.cont [6/8] 0, 128
      %415 = vxpose.xlu0.c.b16.cont [7/8] 0, 128
      %416 = vxpose.xlu0.c.b16.end [8/8] 0, 128
      %v417 = vpop.trf.xlu0
      %v418 = vpop.trf.xlu0
      %v419 = vpop.trf.xlu0
      %v420 = vpop.trf.xlu0
      %v421 = vpop.trf.xlu0
      %v422 = vpop.trf.xlu0
      %v423 = vpop.trf.xlu0
      %v424 = vpop.trf.xlu0
      %v426 = vsel %vm329, %v401, 0
      %v429 = vsel %vm329, %v402, 0
      %v432 = vsel %vm329, %v403, 0
      %v435 = vsel %vm329, %v404, 0
      %v438 = vsel %vm329, %v405, 0
      %v441 = vsel %vm329, %v406, 0
      %v444 = vsel %vm329, %v407, 0
      %v447 = vsel %vm329, %v408, 0
      %v450 = vsel %vm329, %v417, 0
      %v453 = vsel %vm329, %v418, 0
      %v456 = vsel %vm329, %v419, 0
      %v459 = vsel %vm329, %v420, 0
      %v462 = vsel %vm329, %v421, 0
      %v465 = vsel %vm329, %v422, 0
      %v468 = vsel %vm329, %v423, 0
      %v471 = vsel %vm329, %v424, 0
      %473 = vmatprep.subr.bf16.mxu0 %v390
      %474 = vmatpush1.bf16.msra.mxu0 %v389
      %475 = vmatprep.subr.bf16.mxu0 %v392
      %476 = vmatpush1.bf16.msra.mxu0 %v391
      %477 = vmatprep.subr.bf16.mxu0 0
      %478 = vmatpush1.bf16.msra.mxu0 0
      %479 = vmatprep.subr.bf16.mxu0 0
      %480 = vmatpush1.bf16.msra.mxu0 0
      %481 = vmatprep.subr.bf16.mxu0 0
      %482 = vmatpush1.bf16.msra.mxu0 0
      %483 = vmatprep.subr.bf16.mxu0 0
      %484 = vmatpush1.bf16.msra.mxu0 0
      %485 = vmatprep.subr.bf16.mxu0 0
      %486 = vmatpush1.bf16.msra.mxu0 0
      %487 = vmatprep.subr.bf16.mxu0 0
      %488 = vmatpush1.bf16.msra.mxu0 0
      %489 = vmatprep.subr.bf16.mxu0 0
      %490 = vmatpush1.bf16.msra.mxu0 0
      %491 = vmatprep.subr.bf16.mxu0 0
      %492 = vmatpush1.bf16.msra.mxu0 0
      %493 = vmatprep.subr.bf16.mxu0 0
      %494 = vmatpush1.bf16.msra.mxu0 0
      %495 = vmatprep.subr.bf16.mxu0 0
      %496 = vmatpush1.bf16.msra.mxu0 0
      %497 = vmatprep.subr.bf16.mxu0 0
      %498 = vmatpush1.bf16.msra.mxu0 0
      %499 = vmatprep.subr.bf16.mxu0 0
      %500 = vmatpush1.bf16.msra.mxu0 0
      %501 = vmatprep.subr.bf16.mxu0 0
      %502 = vmatpush1.bf16.msra.mxu0 0
      %503 = vmatprep.subr.bf16.mxu0 0
      %504 = vmatpush1.bf16.msra.mxu0 0
      %505 = vmatprep.mubr.bf16.mxu0 0
      %506 = vmatmul.mubr.bf16.gmra.mrb[0].mxu0 %v426
      %v507 = vpop.f32.mrb[0].mxu0
      %v508 = vadd.f32 0.0, %v507
      %v509 = vpop.f32.mrb[0].mxu0
      %v510 = vadd.f32 0.0, %v509
      %v511 = vpop.f32.mrb[0].mxu0
      %v512 = vadd.f32 0.0, %v511
      %v513 = vpop.f32.mrb[0].mxu0
      %v514 = vadd.f32 0.0, %v513
      %515 = vmatprep.mubr.bf16.mxu0 0
      %516 = vmatmul.mubr.bf16.gmra.mrb[0].mxu0 %v429
      %v517 = vpop.f32.mrb[0].mxu0
      %v518 = vadd.f32 0.0, %v517
      %v519 = vpop.f32.mrb[0].mxu0
      %v520 = vadd.f32 0.0, %v519
      %v521 = vpop.f32.mrb[0].mxu0
      %v522 = vadd.f32 0.0, %v521
      %v523 = vpop.f32.mrb[0].mxu0
      %v524 = vadd.f32 0.0, %v523
      %525 = vmatprep.mubr.bf16.mxu0 0
      %526 = vmatmul.mubr.bf16.gmra.mrb[0].mxu0 %v432
      %v527 = vpop.f32.mrb[0].mxu0
      %v528 = vadd.f32 0.0, %v527
      %v529 = vpop.f32.mrb[0].mxu0
      %v530 = vadd.f32 0.0, %v529
      %v531 = vpop.f32.mrb[0].mxu0
      %v532 = vadd.f32 0.0, %v531
      %v533 = vpop.f32.mrb[0].mxu0
      %v534 = vadd.f32 0.0, %v533
      %535 = vmatprep.mubr.bf16.mxu0 0
      %536 = vmatmul.mubr.bf16.gmra.mrb[0].mxu0 %v435
      %v537 = vpop.f32.mrb[0].mxu0
      %v538 = vadd.f32 0.0, %v537
      %v539 = vpop.f32.mrb[0].mxu0
      %v540 = vadd.f32 0.0, %v539
      %v541 = vpop.f32.mrb[0].mxu0
      %v542 = vadd.f32 0.0, %v541
      %v543 = vpop.f32.mrb[0].mxu0
      %v544 = vadd.f32 0.0, %v543
      %545 = vmatprep.mubr.bf16.mxu0 0
      %546 = vmatmul.mubr.bf16.gmra.mrb[0].mxu0 %v438
      %v547 = vpop.f32.mrb[0].mxu0
      %v548 = vadd.f32 0.0, %v547
      %v549 = vpop.f32.mrb[0].mxu0
      %v550 = vadd.f32 0.0, %v549
      %v551 = vpop.f32.mrb[0].mxu0
      %v552 = vadd.f32 0.0, %v551
      %v553 = vpop.f32.mrb[0].mxu0
      %v554 = vadd.f32 0.0, %v553
      %555 = vmatprep.mubr.bf16.mxu0 0
      %556 = vmatmul.mubr.bf16.gmra.mrb[0].mxu0 %v441
      %v557 = vpop.f32.mrb[0].mxu0
      %v558 = vadd.f32 0.0, %v557
      %v559 = vpop.f32.mrb[0].mxu0
      %v560 = vadd.f32 0.0, %v559
      %v561 = vpop.f32.mrb[0].mxu0
      %v562 = vadd.f32 0.0, %v561
      %v563 = vpop.f32.mrb[0].mxu0
      %v564 = vadd.f32 0.0, %v563
      %565 = vmatprep.mubr.bf16.mxu0 0
      %566 = vmatmul.mubr.bf16.gmra.mrb[0].mxu0 %v444
      %v567 = vpop.f32.mrb[0].mxu0
      %v568 = vadd.f32 0.0, %v567
      %v569 = vpop.f32.mrb[0].mxu0
      %v570 = vadd.f32 0.0, %v569
      %v571 = vpop.f32.mrb[0].mxu0
      %v572 = vadd.f32 0.0, %v571
      %v573 = vpop.f32.mrb[0].mxu0
      %v574 = vadd.f32 0.0, %v573
      %575 = vmatprep.mubr.bf16.mxu0 0
      %576 = vmatmul.mubr.bf16.gmra.mrb[0].mxu0 %v447
      %v577 = vpop.f32.mrb[0].mxu0
      %v578 = vadd.f32 0.0, %v577
      %v579 = vpop.f32.mrb[0].mxu0
      %v580 = vadd.f32 0.0, %v579
      %v581 = vpop.f32.mrb[0].mxu0
      %v582 = vadd.f32 0.0, %v581
      %v583 = vpop.f32.mrb[0].mxu0
      %v584 = vadd.f32 0.0, %v583
      %585 = vmatprep.mubr.bf16.mxu0 0
      %586 = vmatmul.mubr.bf16.gmra.mrb[0].mxu0 %v450
      %v587 = vpop.f32.mrb[0].mxu0
      %v588 = vadd.f32 0.0, %v587
      %v589 = vpop.f32.mrb[0].mxu0
      %v590 = vadd.f32 0.0, %v589
      %v591 = vpop.f32.mrb[0].mxu0
      %v592 = vadd.f32 0.0, %v591
      %v593 = vpop.f32.mrb[0].mxu0
      %v594 = vadd.f32 0.0, %v593
      %595 = vmatprep.mubr.bf16.mxu0 0
      %596 = vmatmul.mubr.bf16.gmra.mrb[0].mxu0 %v453
      %v597 = vpop.f32.mrb[0].mxu0
      %v598 = vadd.f32 0.0, %v597
      %v599 = vpop.f32.mrb[0].mxu0
      %v600 = vadd.f32 0.0, %v599
      %v601 = vpop.f32.mrb[0].mxu0
      %v602 = vadd.f32 0.0, %v601
      %v603 = vpop.f32.mrb[0].mxu0
      %v604 = vadd.f32 0.0, %v603
      %605 = vmatprep.mubr.bf16.mxu0 0
      %606 = vmatmul.mubr.bf16.gmra.mrb[0].mxu0 %v456
      %v607 = vpop.f32.mrb[0].mxu0
      %v608 = vadd.f32 0.0, %v607
      %v609 = vpop.f32.mrb[0].mxu0
      %v610 = vadd.f32 0.0, %v609
      %v611 = vpop.f32.mrb[0].mxu0
      %v612 = vadd.f32 0.0, %v611
      %v613 = vpop.f32.mrb[0].mxu0
      %v614 = vadd.f32 0.0, %v613
      %615 = vmatprep.mubr.bf16.mxu0 0
      %616 = vmatmul.mubr.bf16.gmra.mrb[0].mxu0 %v459
      %v617 = vpop.f32.mrb[0].mxu0
      %v618 = vadd.f32 0.0, %v617
      %v619 = vpop.f32.mrb[0].mxu0
      %v620 = vadd.f32 0.0, %v619
      %v621 = vpop.f32.mrb[0].mxu0
      %v622 = vadd.f32 0.0, %v621
      %v623 = vpop.f32.mrb[0].mxu0
      %v624 = vadd.f32 0.0, %v623
      %625 = vmatprep.mubr.bf16.mxu0 0
      %626 = vmatmul.mubr.bf16.gmra.mrb[0].mxu0 %v462
      %v627 = vpop.f32.mrb[0].mxu0
      %v628 = vadd.f32 0.0, %v627
      %v629 = vpop.f32.mrb[0].mxu0
      %v630 = vadd.f32 0.0, %v629
      %v631 = vpop.f32.mrb[0].mxu0
      %v632 = vadd.f32 0.0, %v631
      %v633 = vpop.f32.mrb[0].mxu0
      %v634 = vadd.f32 0.0, %v633
      %635 = vmatprep.mubr.bf16.mxu0 0
      %636 = vmatmul.mubr.bf16.gmra.mrb[0].mxu0 %v465
      %v637 = vpop.f32.mrb[0].mxu0
      %v638 = vadd.f32 0.0, %v637
      %v639 = vpop.f32.mrb[0].mxu0
      %v640 = vadd.f32 0.0, %v639
      %v641 = vpop.f32.mrb[0].mxu0
      %v642 = vadd.f32 0.0, %v641
      %v643 = vpop.f32.mrb[0].mxu0
      %v644 = vadd.f32 0.0, %v643
      %645 = vmatprep.mubr.bf16.mxu0 0
      %646 = vmatmul.mubr.bf16.gmra.mrb[0].mxu0 %v468
      %v647 = vpop.f32.mrb[0].mxu0
      %v648 = vadd.f32 0.0, %v647
      %v649 = vpop.f32.mrb[0].mxu0
      %v650 = vadd.f32 0.0, %v649
      %v651 = vpop.f32.mrb[0].mxu0
      %v652 = vadd.f32 0.0, %v651
      %v653 = vpop.f32.mrb[0].mxu0
      %v654 = vadd.f32 0.0, %v653
      %655 = vmatprep.mubr.bf16.mxu0 0
      %656 = vmatmul.mubr.bf16.gmra.mrb[0].mxu0 %v471
      %v657 = vpop.f32.mrb[0].mxu0
      %v658 = vadd.f32 0.0, %v657
      %v659 = vpop.f32.mrb[0].mxu0
      %v660 = vadd.f32 0.0, %v659
      %v661 = vpop.f32.mrb[0].mxu0
      %v662 = vadd.f32 0.0, %v661
      %v663 = vpop.f32.mrb[0].mxu0
      %v664 = vadd.f32 0.0, %v663
      %665 = vdwg.mxu0
      %v666 = vmax.f32 %v508, %v518
      %v667 = vmax.f32 %v512, %v522
      %v668 = vmax.f32 %v666, %v528
      %v669 = vmax.f32 %v667, %v532
      %v670 = vmax.f32 %v668, %v538
      %v671 = vmax.f32 %v669, %v542
      %v672 = vmax.f32 %v670, %v548
      %v673 = vmax.f32 %v671, %v552
      %v674 = vmax.f32 %v672, %v558
      %v675 = vmax.f32 %v673, %v562
      %v676 = vmax.f32 %v674, %v568
      %v677 = vmax.f32 %v675, %v572
      %v678 = vmax.f32 %v676, %v578
      %v679 = vmax.f32 %v677, %v582
      %v680 = vmax.f32 %v678, %v588
      %v681 = vmax.f32 %v679, %v592
      %v682 = vmax.f32 %v680, %v598
      %v683 = vmax.f32 %v681, %v602
      %v684 = vmax.f32 %v682, %v608
      %v685 = vmax.f32 %v683, %v612
      %v686 = vmax.f32 %v684, %v618
      %v687 = vmax.f32 %v685, %v622
      %v688 = vmax.f32 %v686, %v628
      %v689 = vmax.f32 %v687, %v632
      %v690 = vmax.f32 %v688, %v638
      %v691 = vmax.f32 %v689, %v642
      %v692 = vmax.f32 %v690, %v648
      %v693 = vmax.f32 %v691, %v652
      %v694 = vmax.f32 %v692, %v658
      %v695 = vmax.f32 %v693, %v662
      %v696 = vmax.f32 %v694, %v695
      %v697 = vrot.slane %v696, 4
      %v698 = vmax.f32 %v696, %v697
      %v699 = vrot.slane %v698, 2
      %v700 = vmax.f32 %v698, %v699
      %v701 = vrot.slane %v700, 1
      %v702 = vmax.f32 %v700, %v701
      %v703 = vmax.f32 %v510, %v520
      %v704 = vmax.f32 %v514, %v524
      %v705 = vmax.f32 %v703, %v530
      %v706 = vmax.f32 %v704, %v534
      %v707 = vmax.f32 %v705, %v540
      %v708 = vmax.f32 %v706, %v544
      %v709 = vmax.f32 %v707, %v550
      %v710 = vmax.f32 %v708, %v554
      %v711 = vmax.f32 %v709, %v560
      %v712 = vmax.f32 %v710, %v564
      %v713 = vmax.f32 %v711, %v570
      %v714 = vmax.f32 %v712, %v574
      %v715 = vmax.f32 %v713, %v580
      %v716 = vmax.f32 %v714, %v584
      %v717 = vmax.f32 %v715, %v590
      %v718 = vmax.f32 %v716, %v594
      %v719 = vmax.f32 %v717, %v600
      %v720 = vmax.f32 %v718, %v604
      %v721 = vmax.f32 %v719, %v610
      %v722 = vmax.f32 %v720, %v614
      %v723 = vmax.f32 %v721, %v620
      %v724 = vmax.f32 %v722, %v624
      %v725 = vmax.f32 %v723, %v630
      %v726 = vmax.f32 %v724, %v634
      %v727 = vmax.f32 %v725, %v640
      %v728 = vmax.f32 %v726, %v644
      %v729 = vmax.f32 %v727, %v650
      %v730 = vmax.f32 %v728, %v654
      %v731 = vmax.f32 %v729, %v660
      %v732 = vmax.f32 %v730, %v664
      %v733 = vmax.f32 %v731, %v732
      %v734 = vrot.slane %v733, 4
      %v735 = vmax.f32 %v733, %v734
      %v736 = vrot.slane %v735, 2
      %v737 = vmax.f32 %v735, %v736
      %v738 = vrot.slane %v737, 1
      %v739 = vmax.f32 %v737, %v738
      %v740 = vsub.f32 %v508, %v702
      %v741 = vsub.f32 %v510, %v739
      %v742 = vsub.f32 %v512, %v702
      %v743 = vsub.f32 %v514, %v739
      %v744 = vsub.f32 %v518, %v702
      %v745 = vsub.f32 %v520, %v739
      %v746 = vsub.f32 %v522, %v702
      %v747 = vsub.f32 %v524, %v739
      %v748 = vsub.f32 %v528, %v702
      %v749 = vsub.f32 %v530, %v739
      %v750 = vsub.f32 %v532, %v702
      %v751 = vsub.f32 %v534, %v739
      %v752 = vsub.f32 %v538, %v702
      %v753 = vsub.f32 %v540, %v739
      %v754 = vsub.f32 %v542, %v702
      %v755 = vsub.f32 %v544, %v739
      %v756 = vsub.f32 %v548, %v702
      %v757 = vsub.f32 %v550, %v739
      %v758 = vsub.f32 %v552, %v702
      %v759 = vsub.f32 %v554, %v739
      %v760 = vsub.f32 %v558, %v702
      %v761 = vsub.f32 %v560, %v739
      %v762 = vsub.f32 %v562, %v702
      %v763 = vsub.f32 %v564, %v739
      %v764 = vsub.f32 %v568, %v702
      %v765 = vsub.f32 %v570, %v739
      %v766 = vsub.f32 %v572, %v702
      %v767 = vsub.f32 %v574, %v739
      %v768 = vsub.f32 %v578, %v702
      %v769 = vsub.f32 %v580, %v739
      %v770 = vsub.f32 %v582, %v702
      %v771 = vsub.f32 %v584, %v739
      %v772 = vsub.f32 %v588, %v702
      %v773 = vsub.f32 %v590, %v739
      %v774 = vsub.f32 %v592, %v702
      %v775 = vsub.f32 %v594, %v739
      %v776 = vsub.f32 %v598, %v702
      %v777 = vsub.f32 %v600, %v739
      %v778 = vsub.f32 %v602, %v702
      %v779 = vsub.f32 %v604, %v739
      %v780 = vsub.f32 %v608, %v702
      %v781 = vsub.f32 %v610, %v739
      %v782 = vsub.f32 %v612, %v702
      %v783 = vsub.f32 %v614, %v739
      %v784 = vsub.f32 %v618, %v702
      %v785 = vsub.f32 %v620, %v739
      %v786 = vsub.f32 %v622, %v702
      %v787 = vsub.f32 %v624, %v739
      %v788 = vsub.f32 %v628, %v702
      %v789 = vsub.f32 %v630, %v739
      %v790 = vsub.f32 %v632, %v702
      %v791 = vsub.f32 %v634, %v739
      %v792 = vsub.f32 %v638, %v702
      %v793 = vsub.f32 %v640, %v739
      %v794 = vsub.f32 %v642, %v702
      %v795 = vsub.f32 %v644, %v739
      %v796 = vsub.f32 %v648, %v702
      %v797 = vsub.f32 %v650, %v739
      %v798 = vsub.f32 %v652, %v702
      %v799 = vsub.f32 %v654, %v739
      %v800 = vsub.f32 %v658, %v702
      %v801 = vsub.f32 %v660, %v739
      %v802 = vsub.f32 %v662, %v702
      %v803 = vsub.f32 %v664, %v739
      %v804 = vmul.f32 %v740, 1.442695
      %v805 = vpow.pop %v804
      %v806 = vmul.f32 %v741, 1.442695
      %v807 = vpow.pop %v806
      %v808 = vmul.f32 %v742, 1.442695
      %v809 = vpow.pop %v808
      %v810 = vmul.f32 %v743, 1.442695
      %v811 = vpow.pop %v810
      %v812 = vmul.f32 %v744, 1.442695
      %v813 = vpow.pop %v812
      %v814 = vmul.f32 %v745, 1.442695
      %v815 = vpow.pop %v814
      %v816 = vmul.f32 %v746, 1.442695
      %v817 = vpow.pop %v816
      %v818 = vmul.f32 %v747, 1.442695
      %v819 = vpow.pop %v818
      %v820 = vmul.f32 %v748, 1.442695
      %v821 = vpow.pop %v820
      %v822 = vmul.f32 %v749, 1.442695
      %v823 = vpow.pop %v822
      %v824 = vmul.f32 %v750, 1.442695
      %v825 = vpow.pop %v824
      %v826 = vmul.f32 %v751, 1.442695
      %v827 = vpow.pop %v826
      %v828 = vmul.f32 %v752, 1.442695
      %v829 = vpow.pop %v828
      %v830 = vmul.f32 %v753, 1.442695
      %v831 = vpow.pop %v830
      %v832 = vmul.f32 %v754, 1.442695
      %v833 = vpow.pop %v832
      %v834 = vmul.f32 %v755, 1.442695
      %v835 = vpow.pop %v834
      %v836 = vmul.f32 %v756, 1.442695
      %v837 = vpow.pop %v836
      %v838 = vmul.f32 %v757, 1.442695
      %v839 = vpow.pop %v838
      %v840 = vmul.f32 %v758, 1.442695
      %v841 = vpow.pop %v840
      %v842 = vmul.f32 %v759, 1.442695
      %v843 = vpow.pop %v842
      %v844 = vmul.f32 %v760, 1.442695
      %v845 = vpow.pop %v844
      %v846 = vmul.f32 %v761, 1.442695
      %v847 = vpow.pop %v846
      %v848 = vmul.f32 %v762, 1.442695
      %v849 = vpow.pop %v848
      %v850 = vmul.f32 %v763, 1.442695
      %v851 = vpow.pop %v850
      %v852 = vmul.f32 %v764, 1.442695
      %v853 = vpow.pop %v852
      %v854 = vmul.f32 %v765, 1.442695
      %v855 = vpow.pop %v854
      %v856 = vmul.f32 %v766, 1.442695
      %v857 = vpow.pop %v856
      %v858 = vmul.f32 %v767, 1.442695
      %v859 = vpow.pop %v858
      %v860 = vmul.f32 %v768, 1.442695
      %v861 = vpow.pop %v860
      %v862 = vmul.f32 %v769, 1.442695
      %v863 = vpow.pop %v862
      %v864 = vmul.f32 %v770, 1.442695
      %v865 = vpow.pop %v864
      %v866 = vmul.f32 %v771, 1.442695
      %v867 = vpow.pop %v866
      %v868 = vmul.f32 %v772, 1.442695
      %v869 = vpow.pop %v868
      %v870 = vmul.f32 %v773, 1.442695
      %v871 = vpow.pop %v870
      %v872 = vmul.f32 %v774, 1.442695
      %v873 = vpow.pop %v872
      %v874 = vmul.f32 %v775, 1.442695
      %v875 = vpow.pop %v874
      %v876 = vmul.f32 %v776, 1.442695
      %v877 = vpow.pop %v876
      %v878 = vmul.f32 %v777, 1.442695
      %v879 = vpow.pop %v878
      %v880 = vmul.f32 %v778, 1.442695
      %v881 = vpow.pop %v880
      %v882 = vmul.f32 %v779, 1.442695
      %v883 = vpow.pop %v882
      %v884 = vmul.f32 %v780, 1.442695
      %v885 = vpow.pop %v884
      %v886 = vmul.f32 %v781, 1.442695
      %v887 = vpow.pop %v886
      %v888 = vmul.f32 %v782, 1.442695
      %v889 = vpow.pop %v888
      %v890 = vmul.f32 %v783, 1.442695
      %v891 = vpow.pop %v890
      %v892 = vmul.f32 %v784, 1.442695
      %v893 = vpow.pop %v892
      %v894 = vmul.f32 %v785, 1.442695
      %v895 = vpow.pop %v894
      %v896 = vmul.f32 %v786, 1.442695
      %v897 = vpow.pop %v896
      %v898 = vmul.f32 %v787, 1.442695
      %v899 = vpow.pop %v898
      %v900 = vmul.f32 %v788, 1.442695
      %v901 = vpow.pop %v900
      %v902 = vmul.f32 %v789, 1.442695
      %v903 = vpow.pop %v902
      %v904 = vmul.f32 %v790, 1.442695
      %v905 = vpow.pop %v904
      %v906 = vmul.f32 %v791, 1.442695
      %v907 = vpow.pop %v906
      %v908 = vmul.f32 %v792, 1.442695
      %v909 = vpow.pop %v908
      %v910 = vmul.f32 %v793, 1.442695
      %v911 = vpow.pop %v910
      %v912 = vmul.f32 %v794, 1.442695
      %v913 = vpow.pop %v912
      %v914 = vmul.f32 %v795, 1.442695
      %v915 = vpow.pop %v914
      %v916 = vmul.f32 %v796, 1.442695
      %v917 = vpow.pop %v916
      %v918 = vmul.f32 %v797, 1.442695
      %v919 = vpow.pop %v918
      %v920 = vmul.f32 %v798, 1.442695
      %v921 = vpow.pop %v920
      %v922 = vmul.f32 %v799, 1.442695
      %v923 = vpow.pop %v922
      %v924 = vmul.f32 %v800, 1.442695
      %v925 = vpow.pop %v924
      %v926 = vmul.f32 %v801, 1.442695
      %v927 = vpow.pop %v926
      %v928 = vmul.f32 %v802, 1.442695
      %v929 = vpow.pop %v928
      %v930 = vmul.f32 %v803, 1.442695
      %v931 = vpow.pop %v930
      %v932 = vadd.f32 %v805, %v809
      %v933 = vadd.f32 %v932, %v813
      %v934 = vadd.f32 %v933, %v817
      %v935 = vadd.f32 %v934, %v821
      %v936 = vadd.f32 %v935, %v825
      %v937 = vadd.f32 %v936, %v829
      %v938 = vadd.f32 %v937, %v833
      %v939 = vadd.f32 %v938, %v837
      %v940 = vadd.f32 %v939, %v841
      %v941 = vadd.f32 %v940, %v845
      %v942 = vadd.f32 %v941, %v849
      %v943 = vadd.f32 %v942, %v853
      %v944 = vadd.f32 %v943, %v857
      %v945 = vadd.f32 %v944, %v861
      %v946 = vadd.f32 %v945, %v865
      %v947 = vadd.f32 %v946, %v869
      %v948 = vadd.f32 %v947, %v873
      %v949 = vadd.f32 %v948, %v877
      %v950 = vadd.f32 %v949, %v881
      %v951 = vadd.f32 %v950, %v885
      %v952 = vadd.f32 %v951, %v889
      %v953 = vadd.f32 %v952, %v893
      %v954 = vadd.f32 %v953, %v897
      %v955 = vadd.f32 %v954, %v901
      %v956 = vadd.f32 %v955, %v905
      %v957 = vadd.f32 %v956, %v909
      %v958 = vadd.f32 %v957, %v913
      %v959 = vadd.f32 %v958, %v917
      %v960 = vadd.f32 %v959, %v921
      %v961 = vadd.f32 %v960, %v925
      %v962 = vadd.f32 %v961, %v929
      %v963 = vrot.slane %v962, 4
      %v964 = vadd.f32 %v962, %v963
      %v965 = vrot.slane %v964, 2
      %v966 = vadd.f32 %v964, %v965
      %v967 = vrot.slane %v966, 1
      %v968 = vadd.f32 %v966, %v967
      %v969 = vadd.f32 %v807, %v811
      %v970 = vadd.f32 %v969, %v815
      %v971 = vadd.f32 %v970, %v819
      %v972 = vadd.f32 %v971, %v823
      %v973 = vadd.f32 %v972, %v827
      %v974 = vadd.f32 %v973, %v831
      %v975 = vadd.f32 %v974, %v835
      %v976 = vadd.f32 %v975, %v839
      %v977 = vadd.f32 %v976, %v843
      %v978 = vadd.f32 %v977, %v847
      %v979 = vadd.f32 %v978, %v851
      %v980 = vadd.f32 %v979, %v855
      %v981 = vadd.f32 %v980, %v859
      %v982 = vadd.f32 %v981, %v863
      %v983 = vadd.f32 %v982, %v867
      %v984 = vadd.f32 %v983, %v871
      %v985 = vadd.f32 %v984, %v875
      %v986 = vadd.f32 %v985, %v879
      %v987 = vadd.f32 %v986, %v883
      %v988 = vadd.f32 %v987, %v887
      %v989 = vadd.f32 %v988, %v891
      %v990 = vadd.f32 %v989, %v895
      %v991 = vadd.f32 %v990, %v899
      %v992 = vadd.f32 %v991, %v903
      %v993 = vadd.f32 %v992, %v907
      %v994 = vadd.f32 %v993, %v911
      %v995 = vadd.f32 %v994, %v915
      %v996 = vadd.f32 %v995, %v919
      %v997 = vadd.f32 %v996, %v923
      %v998 = vadd.f32 %v997, %v927
      %v999 = vadd.f32 %v998, %v931
      %v1000 = vrot.slane %v999, 4
      %v1001 = vadd.f32 %v999, %v1000
      %v1002 = vrot.slane %v1001, 2
      %v1003 = vadd.f32 %v1001, %v1002
      %v1004 = vrot.slane %v1003, 1
      %v1005 = vadd.f32 %v1003, %v1004
      %v1006 = vrcp.pop %v968
      %v1007 = vrcp.pop %v1005
      %v1008 = vmul.f32 %v805, %v1006
      %v1009 = vmul.f32 %v807, %v1007
      %v1010 = vmul.f32 %v809, %v1006
      %v1011 = vmul.f32 %v811, %v1007
      %v1012 = vmul.f32 %v813, %v1006
      %v1013 = vmul.f32 %v815, %v1007
      %v1014 = vmul.f32 %v817, %v1006
      %v1015 = vmul.f32 %v819, %v1007
      %v1016 = vmul.f32 %v821, %v1006
      %v1017 = vmul.f32 %v823, %v1007
      %v1018 = vmul.f32 %v825, %v1006
      %v1019 = vmul.f32 %v827, %v1007
      %v1020 = vmul.f32 %v829, %v1006
      %v1021 = vmul.f32 %v831, %v1007
      %v1022 = vmul.f32 %v833, %v1006
      %v1023 = vmul.f32 %v835, %v1007
      %v1024 = vmul.f32 %v837, %v1006
      %v1025 = vmul.f32 %v839, %v1007
      %v1026 = vmul.f32 %v841, %v1006
      %v1027 = vmul.f32 %v843, %v1007
      %v1028 = vmul.f32 %v845, %v1006
      %v1029 = vmul.f32 %v847, %v1007
      %v1030 = vmul.f32 %v849, %v1006
      %v1031 = vmul.f32 %v851, %v1007
      %v1032 = vmul.f32 %v853, %v1006
      %v1033 = vmul.f32 %v855, %v1007
      %v1034 = vmul.f32 %v857, %v1006
      %v1035 = vmul.f32 %v859, %v1007
      %v1036 = vmul.f32 %v861, %v1006
      %v1037 = vmul.f32 %v863, %v1007
      %v1038 = vmul.f32 %v865, %v1006
      %v1039 = vmul.f32 %v867, %v1007
      %v1040 = vmul.f32 %v869, %v1006
      %v1041 = vmul.f32 %v871, %v1007
      %v1042 = vmul.f32 %v873, %v1006
      %v1043 = vmul.f32 %v875, %v1007
      %v1044 = vmul.f32 %v877, %v1006
      %v1045 = vmul.f32 %v879, %v1007
      %v1046 = vmul.f32 %v881, %v1006
      %v1047 = vmul.f32 %v883, %v1007
      %v1048 = vmul.f32 %v885, %v1006
      %v1049 = vmul.f32 %v887, %v1007
      %v1050 = vmul.f32 %v889, %v1006
      %v1051 = vmul.f32 %v891, %v1007
      %v1052 = vmul.f32 %v893, %v1006
      %v1053 = vmul.f32 %v895, %v1007
      %v1054 = vmul.f32 %v897, %v1006
      %v1055 = vmul.f32 %v899, %v1007
      %v1056 = vmul.f32 %v901, %v1006
      %v1057 = vmul.f32 %v903, %v1007
      %v1058 = vmul.f32 %v905, %v1006
      %v1059 = vmul.f32 %v907, %v1007
      %v1060 = vmul.f32 %v909, %v1006
      %v1061 = vmul.f32 %v911, %v1007
      %v1062 = vmul.f32 %v913, %v1006
      %v1063 = vmul.f32 %v915, %v1007
      %v1064 = vmul.f32 %v917, %v1006
      %v1065 = vmul.f32 %v919, %v1007
      %v1066 = vmul.f32 %v921, %v1006
      %v1067 = vmul.f32 %v923, %v1007
      %v1068 = vmul.f32 %v925, %v1006
      %v1069 = vmul.f32 %v927, %v1007
      %v1070 = vmul.f32 %v929, %v1006
      %v1071 = vmul.f32 %v931, %v1007
      %v1072 = vpack.c.bf16 %v1010, %v1008
      %v1073 = vpack.c.bf16 %v1011, %v1009
      %v1074 = vpack.c.bf16 %v1014, %v1012
      %v1075 = vpack.c.bf16 %v1015, %v1013
      %v1076 = vpack.c.bf16 %v1018, %v1016
      %v1077 = vpack.c.bf16 %v1019, %v1017
      %v1078 = vpack.c.bf16 %v1022, %v1020
      %v1079 = vpack.c.bf16 %v1023, %v1021
      %v1080 = vpack.c.bf16 %v1026, %v1024
      %v1081 = vpack.c.bf16 %v1027, %v1025
      %v1082 = vpack.c.bf16 %v1030, %v1028
      %v1083 = vpack.c.bf16 %v1031, %v1029
      %v1084 = vpack.c.bf16 %v1034, %v1032
      %v1085 = vpack.c.bf16 %v1035, %v1033
      %v1086 = vpack.c.bf16 %v1038, %v1036
      %v1087 = vpack.c.bf16 %v1039, %v1037
      %v1088 = vpack.c.bf16 %v1042, %v1040
      %v1089 = vpack.c.bf16 %v1043, %v1041
      %v1090 = vpack.c.bf16 %v1046, %v1044
      %v1091 = vpack.c.bf16 %v1047, %v1045
      %v1092 = vpack.c.bf16 %v1050, %v1048
      %v1093 = vpack.c.bf16 %v1051, %v1049
      %v1094 = vpack.c.bf16 %v1054, %v1052
      %v1095 = vpack.c.bf16 %v1055, %v1053
      %v1096 = vpack.c.bf16 %v1058, %v1056
      %v1097 = vpack.c.bf16 %v1059, %v1057
      %v1098 = vpack.c.bf16 %v1062, %v1060
      %v1099 = vpack.c.bf16 %v1063, %v1061
      %v1100 = vpack.c.bf16 %v1066, %v1064
      %v1101 = vpack.c.bf16 %v1067, %v1065
      %v1102 = vpack.c.bf16 %v1070, %v1068
      %v1103 = vpack.c.bf16 %v1071, %v1069
      %v1104 = vsub.f32 %v267, %v275
      %v1105 = vsub.f32 %v268, %v276
      %v1106 = vsub.f32 %v269, %v277
      %v1107 = vsub.f32 %v270, %v278
      %v1108 = vsub.f32 %v271, %v279
      %v1109 = vsub.f32 %v272, %v280
      %v1110 = vsub.f32 %v273, %v281
      %v1111 = vsub.f32 %v274, %v282
      %v1112 = vmax.f32 %v1104, %v1108
      %v1113 = vmax.f32 %v1106, %v1110
      %v1114 = vmax.f32 %v1112, %v1113
      %v1115 = vrot.slane %v1114, 4
      %v1116 = vmax.f32 %v1114, %v1115
      %v1117 = vrot.slane %v1116, 2
      %v1118 = vmax.f32 %v1116, %v1117
      %v1119 = vrot.slane %v1118, 1
      %v1120 = vmax.f32 %v1118, %v1119
      %v1121 = vmax.f32 %v1105, %v1109
      %v1122 = vmax.f32 %v1107, %v1111
      %v1123 = vmax.f32 %v1121, %v1122
      %v1124 = vrot.slane %v1123, 4
      %v1125 = vmax.f32 %v1123, %v1124
      %v1126 = vrot.slane %v1125, 2
      %v1127 = vmax.f32 %v1125, %v1126
      %v1128 = vrot.slane %v1127, 1
      %v1129 = vmax.f32 %v1127, %v1128
      %v1130 = vsub.f32 %v1104, %v1120
      %v1131 = vsub.f32 %v1105, %v1129
      %v1132 = vsub.f32 %v1106, %v1120
      %v1133 = vsub.f32 %v1107, %v1129
      %v1134 = vsub.f32 %v1108, %v1120
      %v1135 = vsub.f32 %v1109, %v1129
      %v1136 = vsub.f32 %v1110, %v1120
      %v1137 = vsub.f32 %v1111, %v1129
      %v1138 = vmul.f32 %v1130, 1.442695
      %v1139 = vpow.pop %v1138
      %v1140 = vmul.f32 %v1131, 1.442695
      %v1141 = vpow.pop %v1140
      %v1142 = vmul.f32 %v1132, 1.442695
      %v1143 = vpow.pop %v1142
      %v1144 = vmul.f32 %v1133, 1.442695
      %v1145 = vpow.pop %v1144
      %v1146 = vmul.f32 %v1134, 1.442695
      %v1147 = vpow.pop %v1146
      %v1148 = vmul.f32 %v1135, 1.442695
      %v1149 = vpow.pop %v1148
      %v1150 = vmul.f32 %v1136, 1.442695
      %v1151 = vpow.pop %v1150
      %v1152 = vmul.f32 %v1137, 1.442695
      %v1153 = vpow.pop %v1152
      %v1154 = vadd.f32 %v1139, %v1143
      %v1155 = vadd.f32 %v1154, %v1147
      %v1156 = vadd.f32 %v1155, %v1151
      %v1157 = vrot.slane %v1156, 4
      %v1158 = vadd.f32 %v1156, %v1157
      %v1159 = vrot.slane %v1158, 2
      %v1160 = vadd.f32 %v1158, %v1159
      %v1161 = vrot.slane %v1160, 1
      %v1162 = vadd.f32 %v1160, %v1161
      %v1163 = vadd.f32 %v1141, %v1145
      %v1164 = vadd.f32 %v1163, %v1149
      %v1165 = vadd.f32 %v1164, %v1153
      %v1166 = vrot.slane %v1165, 4
      %v1167 = vadd.f32 %v1165, %v1166
      %v1168 = vrot.slane %v1167, 2
      %v1169 = vadd.f32 %v1167, %v1168
      %v1170 = vrot.slane %v1169, 1
      %v1171 = vadd.f32 %v1169, %v1170
      %v1172 = vrcp.pop %v1162
      %v1173 = vrcp.pop %v1171
      %v1174 = vmul.f32 %v1139, %v1172
      %v1175 = vmul.f32 %v1141, %v1173
      %v1176 = vmul.f32 %v1143, %v1172
      %v1177 = vmul.f32 %v1145, %v1173
      %v1178 = vmul.f32 %v1147, %v1172
      %v1179 = vmul.f32 %v1149, %v1173
      %v1180 = vmul.f32 %v1151, %v1172
      %v1181 = vmul.f32 %v1153, %v1173
      %v1182 = vmul.f32 %v1174, %v275
      %v1183 = vmul.f32 %v1175, %v276
      %v1184 = vmul.f32 %v1176, %v277
      %v1185 = vmul.f32 %v1177, %v278
      %v1186 = vmul.f32 %v1178, %v279
      %v1187 = vmul.f32 %v1179, %v280
      %v1188 = vmul.f32 %v1180, %v281
      %v1189 = vmul.f32 %v1181, %v282
      %1190 = vst [vmem:[%s252] sm:$0xff] %v267
      %1191 = vst [vmem:[%s252 + $0x8] sm:$0xff] %v268
      %1192 = vst [vmem:[%s252 + $0x10] sm:$0xff] %v269
      %1193 = vst [vmem:[%s252 + $0x18] sm:$0xff] %v270
      %1194 = vst [vmem:[%s252 + $0x20] sm:$0xff] %v271
      %1195 = vst [vmem:[%s252 + $0x28] sm:$0xff] %v272
      %1196 = vst [vmem:[%s252 + $0x30] sm:$0xff] %v273
      %1197 = vst [vmem:[%s252 + $0x38] sm:$0xff] %v274
      %1198 = vmatprep.subr.bf16.mxu0 %v1073
      %1199 = vmatpush1.bf16.msra.mxu0 %v1072
      %1200 = vmatprep.subr.bf16.mxu0 %v1075
      %1201 = vmatpush1.bf16.msra.mxu0 %v1074
      %1202 = vmatprep.subr.bf16.mxu0 %v1077
      %1203 = vmatpush1.bf16.msra.mxu0 %v1076
      %1204 = vmatprep.subr.bf16.mxu0 %v1079
      %1205 = vmatpush1.bf16.msra.mxu0 %v1078
      %1206 = vmatprep.subr.bf16.mxu0 %v1081
      %1207 = vmatpush1.bf16.msra.mxu0 %v1080
      %1208 = vmatprep.subr.bf16.mxu0 %v1083
      %1209 = vmatpush1.bf16.msra.mxu0 %v1082
      %1210 = vmatprep.subr.bf16.mxu0 %v1085
      %1211 = vmatpush1.bf16.msra.mxu0 %v1084
      %1212 = vmatprep.subr.bf16.mxu0 %v1087
      %1213 = vmatpush1.bf16.msra.mxu0 %v1086
      %1214 = vmatprep.subr.bf16.mxu0 %v1089
      %1215 = vmatpush1.bf16.msra.mxu0 %v1088
      %1216 = vmatprep.subr.bf16.mxu0 %v1091
      %1217 = vmatpush1.bf16.msra.mxu0 %v1090
      %1218 = vmatprep.subr.bf16.mxu0 %v1093
      %1219 = vmatpush1.bf16.msra.mxu0 %v1092
      %1220 = vmatprep.subr.bf16.mxu0 %v1095
      %1221 = vmatpush1.bf16.msra.mxu0 %v1094
      %1222 = vmatprep.subr.bf16.mxu0 %v1097
      %1223 = vmatpush1.bf16.msra.mxu0 %v1096
      %1224 = vmatprep.subr.bf16.mxu0 %v1099
      %1225 = vmatpush1.bf16.msra.mxu0 %v1098
      %1226 = vmatprep.subr.bf16.mxu0 %v1101
      %1227 = vmatpush1.bf16.msra.mxu0 %v1100
      %1228 = vmatprep.subr.bf16.mxu0 %v1103
      %1229 = vmatpush1.bf16.msra.mxu0 %v1102
      %1230 = vmatprep.mubr.bf16.mxu0 %v296
      %1231 = vmatmul.mubr.bf16.gmra.mrb[0].mxu0 %v295
      %v1232 = vpop.f32.mrb[0].mxu0
      %v1233 = vadd.f32 %v1182, %v1232
      %v1234 = vpop.f32.mrb[0].mxu0
      %v1235 = vadd.f32 %v1183, %v1234
      %v1236 = vpop.f32.mrb[0].mxu0
      %v1237 = vadd.f32 %v1184, %v1236
      %v1238 = vpop.f32.mrb[0].mxu0
      %v1239 = vadd.f32 %v1185, %v1238
      %1240 = vmatprep.mubr.bf16.mxu0 %v298
      %1241 = vmatmul.mubr.bf16.gmra.mrb[0].mxu0 %v297
      %v1242 = vpop.f32.mrb[0].mxu0
      %v1243 = vadd.f32 %v1186, %v1242
      %v1244 = vpop.f32.mrb[0].mxu0
      %v1245 = vadd.f32 %v1187, %v1244
      %v1246 = vpop.f32.mrb[0].mxu0
      %v1247 = vadd.f32 %v1188, %v1246
      %v1248 = vpop.f32.mrb[0].mxu0
      %v1249 = vadd.f32 %v1189, %v1248
      %1250 = vdwg.mxu0
      %1251 = vst [vmem:[%s252 + $0x40] sm:$0xff] %v1233
      %1252 = vst [vmem:[%s252 + $0x48] sm:$0xff] %v1235
      %1253 = vst [vmem:[%s252 + $0x50] sm:$0xff] %v1237
      %1254 = vst [vmem:[%s252 + $0x58] sm:$0xff] %v1239
      %1255 = vst [vmem:[%s252 + $0x60] sm:$0xff] %v1243
      %1256 = vst [vmem:[%s252 + $0x68] sm:$0xff] %v1245
      %1257 = vst [vmem:[%s252 + $0x70] sm:$0xff] %v1247
      %1258 = vst [vmem:[%s252 + $0x78] sm:$0xff] %v1249
      %v1259 = vld [vmem:[%s247] sm:$0xff]
      %v1260 = vld [vmem:[%s247 + $0x8] sm:$0xff]
      %v1261 = vld [vmem:[%s247 + $0x10] sm:$0xff]
      %v1262 = vld [vmem:[%s247 + $0x18] sm:$0xff]
      %v1263 = vld [vmem:[%s247 + $0x20] sm:$0xff]
      %v1264 = vld [vmem:[%s247 + $0x28] sm:$0xff]
      %v1265 = vld [vmem:[%s247 + $0x30] sm:$0xff]
      %v1266 = vld [vmem:[%s247 + $0x38] sm:$0xff]
      %v1267 = vld [vmem:[%s247 + $0x40] sm:$0xff]
      %v1268 = vld [vmem:[%s247 + $0x48] sm:$0xff]
      %v1269 = vld [vmem:[%s247 + $0x50] sm:$0xff]
      %v1270 = vld [vmem:[%s247 + $0x58] sm:$0xff]
      %v1271 = vld [vmem:[%s247 + $0x60] sm:$0xff]
      %v1272 = vld [vmem:[%s247 + $0x68] sm:$0xff]
      %v1273 = vld [vmem:[%s247 + $0x70] sm:$0xff]
      %v1274 = vld [vmem:[%s247 + $0x78] sm:$0xff]
      %v1275 = vld [vmem:[%s242] sm:$0xff]
      %v1276 = vld [vmem:[%s242 + $0x8] sm:$0xff]
      %v1277 = vld [vmem:[%s242 + $0x10] sm:$0xff]
      %v1278 = vld [vmem:[%s242 + $0x18] sm:$0xff]
      %v1279 = vld [vmem:[%s242 + $0x20] sm:$0xff]
      %v1280 = vld [vmem:[%s242 + $0x28] sm:$0xff]
      %v1281 = vld [vmem:[%s242 + $0x30] sm:$0xff]
      %v1282 = vld [vmem:[%s242 + $0x38] sm:$0xff]
      %v1283 = vpack.c.bf16 %v1261, %v1259
      %v1284 = vpack.c.bf16 %v1262, %v1260
      %v1285 = vpack.c.bf16 %v1265, %v1263
      %v1286 = vpack.c.bf16 %v1266, %v1264
      %v1287 = vpack.c.bf16 %v1277, %v1275
      %v1288 = vpack.c.bf16 %v1278, %v1276
      %v1289 = vpack.c.bf16 %v1281, %v1279
      %v1290 = vpack.c.bf16 %v1282, %v1280
      %1291 = vmatprep.subr.bf16.mxu0 %v1284
      %1292 = vmatpush1.bf16.msra.mxu0 %v1283
      %1293 = vmatprep.subr.bf16.mxu0 %v1286
      %1294 = vmatpush1.bf16.msra.mxu0 %v1285
      %1295 = vmatprep.subr.bf16.mxu0 0
      %1296 = vmatpush1.bf16.msra.mxu0 0
      %1297 = vmatprep.subr.bf16.mxu0 0
      %1298 = vmatpush1.bf16.msra.mxu0 0
      %1299 = vmatprep.subr.bf16.mxu0 0
      %1300 = vmatpush1.bf16.msra.mxu0 0
      %1301 = vmatprep.subr.bf16.mxu0 0
      %1302 = vmatpush1.bf16.msra.mxu0 0
      %1303 = vmatprep.subr.bf16.mxu0 0
      %1304 = vmatpush1.bf16.msra.mxu0 0
      %1305 = vmatprep.subr.bf16.mxu0 0
      %1306 = vmatpush1.bf16.msra.mxu0 0
      %1307 = vmatprep.subr.bf16.mxu0 0
      %1308 = vmatpush1.bf16.msra.mxu0 0
      %1309 = vmatprep.subr.bf16.mxu0 0
      %1310 = vmatpush1.bf16.msra.mxu0 0
      %1311 = vmatprep.subr.bf16.mxu0 0
      %1312 = vmatpush1.bf16.msra.mxu0 0
      %1313 = vmatprep.subr.bf16.mxu0 0
      %1314 = vmatpush1.bf16.msra.mxu0 0
      %1315 = vmatprep.subr.bf16.mxu0 0
      %1316 = vmatpush1.bf16.msra.mxu0 0
      %1317 = vmatprep.subr.bf16.mxu0 0
      %1318 = vmatpush1.bf16.msra.mxu0 0
      %1319 = vmatprep.subr.bf16.mxu0 0
      %1320 = vmatpush1.bf16.msra.mxu0 0
      %1321 = vmatprep.subr.bf16.mxu0 0
      %1322 = vmatpush1.bf16.msra.mxu0 0
      %1323 = vmatprep.mubr.bf16.mxu0 0
      %1324 = vmatmul.mubr.bf16.gmra.mrb[0].mxu0 %v331
      %v1325 = vpop.f32.mrb[0].mxu0
      %v1326 = vadd.f32 %v302, %v1325
      %v1327 = vpop.f32.mrb[0].mxu0
      %v1328 = vadd.f32 %v302, %v1327
      %v1329 = vpop.f32.mrb[0].mxu0
      %v1330 = vadd.f32 %v307, %v1329
      %v1331 = vpop.f32.mrb[0].mxu0
      %v1332 = vadd.f32 %v307, %v1331
      %1333 = vmatprep.mubr.bf16.mxu0 0
      %1334 = vmatmul.mubr.bf16.gmra.mrb[0].mxu0 %v334
      %v1335 = vpop.f32.mrb[0].mxu0
      %v1336 = vadd.f32 %v312, %v1335
      %v1337 = vpop.f32.mrb[0].mxu0
      %v1338 = vadd.f32 %v312, %v1337
      %v1339 = vpop.f32.mrb[0].mxu0
      %v1340 = vadd.f32 %v317, %v1339
      %v1341 = vpop.f32.mrb[0].mxu0
      %v1342 = vadd.f32 %v317, %v1341
      %1343 = vdwg.mxu0
      %v1344 = vpack.c.bf16 %v1330, %v1326
      %v1345 = vpack.c.bf16 %v1332, %v1328
      %v1346 = vpack.c.bf16 %v1340, %v1336
      %v1347 = vpack.c.bf16 %v1342, %v1338
      %1348 = vxpose.xlu0.c.b16.start [1/8] %v1287, 128
      %1349 = vxpose.xlu0.c.b16.cont [2/8] %v1289, 128
      %1350 = vxpose.xlu0.c.b16.cont [3/8] 0, 128
      %1351 = vxpose.xlu0.c.b16.cont [4/8] 0, 128
      %1352 = vxpose.xlu0.c.b16.cont [5/8] 0, 128
      %1353 = vxpose.xlu0.c.b16.cont [6/8] 0, 128
      %1354 = vxpose.xlu0.c.b16.cont [7/8] 0, 128
      %1355 = vxpose.xlu0.c.b16.end [8/8] 0, 128
      %v1356 = vpop.trf.xlu0
      %v1357 = vpop.trf.xlu0
      %v1358 = vpop.trf.xlu0
      %v1359 = vpop.trf.xlu0
      %v1360 = vpop.trf.xlu0
      %v1361 = vpop.trf.xlu0
      %v1362 = vpop.trf.xlu0
      %v1363 = vpop.trf.xlu0
      %1364 = vxpose.xlu0.c.b16.start [1/8] %v1288, 128
      %1365 = vxpose.xlu0.c.b16.cont [2/8] %v1290, 128
      %1366 = vxpose.xlu0.c.b16.cont [3/8] 0, 128
      %1367 = vxpose.xlu0.c.b16.cont [4/8] 0, 128
      %1368 = vxpose.xlu0.c.b16.cont [5/8] 0, 128
      %1369 = vxpose.xlu0.c.b16.cont [6/8] 0, 128
      %1370 = vxpose.xlu0.c.b16.cont [7/8] 0, 128
      %1371 = vxpose.xlu0.c.b16.end [8/8] 0, 128
      %v1372 = vpop.trf.xlu0
      %v1373 = vpop.trf.xlu0
      %v1374 = vpop.trf.xlu0
      %v1375 = vpop.trf.xlu0
      %v1376 = vpop.trf.xlu0
      %v1377 = vpop.trf.xlu0
      %v1378 = vpop.trf.xlu0
      %v1379 = vpop.trf.xlu0
      %v1381 = vsel %vm329, %v1356, 0
      %v1384 = vsel %vm329, %v1357, 0
      %v1387 = vsel %vm329, %v1358, 0
      %v1390 = vsel %vm329, %v1359, 0
      %v1393 = vsel %vm329, %v1360, 0
      %v1396 = vsel %vm329, %v1361, 0
      %v1399 = vsel %vm329, %v1362, 0
      %v1402 = vsel %vm329, %v1363, 0
      %v1405 = vsel %vm329, %v1372, 0
      %v1408 = vsel %vm329, %v1373, 0
      %v1411 = vsel %vm329, %v1374, 0
      %v1414 = vsel %vm329, %v1375, 0
      %v1417 = vsel %vm329, %v1376, 0
      %v1420 = vsel %vm329, %v1377, 0
      %v1423 = vsel %vm329, %v1378, 0
      %v1426 = vsel %vm329, %v1379, 0
      %1428 = vmatprep.subr.bf16.mxu0 %v1345
      %1429 = vmatpush1.bf16.msra.mxu0 %v1344
      %1430 = vmatprep.subr.bf16.mxu0 %v1347
      %1431 = vmatpush1.bf16.msra.mxu0 %v1346
      %1432 = vmatprep.subr.bf16.mxu0 0
      %1433 = vmatpush1.bf16.msra.mxu0 0
      %1434 = vmatprep.subr.bf16.mxu0 0
      %1435 = vmatpush1.bf16.msra.mxu0 0
      %1436 = vmatprep.subr.bf16.mxu0 0
      %1437 = vmatpush1.bf16.msra.mxu0 0
      %1438 = vmatprep.subr.bf16.mxu0 0
      %1439 = vmatpush1.bf16.msra.mxu0 0
      %1440 = vmatprep.subr.bf16.mxu0 0
      %1441 = vmatpush1.bf16.msra.mxu0 0
      %1442 = vmatprep.subr.bf16.mxu0 0
      %1443 = vmatpush1.bf16.msra.mxu0 0
      %1444 = vmatprep.subr.bf16.mxu0 0
      %1445 = vmatpush1.bf16.msra.mxu0 0
      %1446 = vmatprep.subr.bf16.mxu0 0
      %1447 = vmatpush1.bf16.msra.mxu0 0
      %1448 = vmatprep.subr.bf16.mxu0 0
      %1449 = vmatpush1.bf16.msra.mxu0 0
      %1450 = vmatprep.subr.bf16.mxu0 0
      %1451 = vmatpush1.bf16.msra.mxu0 0
      %1452 = vmatprep.subr.bf16.mxu0 0
      %1453 = vmatpush1.bf16.msra.mxu0 0
      %1454 = vmatprep.subr.bf16.mxu0 0
      %1455 = vmatpush1.bf16.msra.mxu0 0
      %1456 = vmatprep.subr.bf16.mxu0 0
      %1457 = vmatpush1.bf16.msra.mxu0 0
      %1458 = vmatprep.subr.bf16.mxu0 0
      %1459 = vmatpush1.bf16.msra.mxu0 0
      %1460 = vmatprep.mubr.bf16.mxu0 0
      %1461 = vmatmul.mubr.bf16.gmra.mrb[0].mxu0 %v1381
      %v1462 = vpop.f32.mrb[0].mxu0
      %v1463 = vadd.f32 0.0, %v1462
      %v1464 = vpop.f32.mrb[0].mxu0
      %v1465 = vadd.f32 0.0, %v1464
      %v1466 = vpop.f32.mrb[0].mxu0
      %v1467 = vadd.f32 0.0, %v1466
      %v1468 = vpop.f32.mrb[0].mxu0
      %v1469 = vadd.f32 0.0, %v1468
      %1470 = vmatprep.mubr.bf16.mxu0 0
      %1471 = vmatmul.mubr.bf16.gmra.mrb[0].mxu0 %v1384
      %v1472 = vpop.f32.mrb[0].mxu0
      %v1473 = vadd.f32 0.0, %v1472
      %v1474 = vpop.f32.mrb[0].mxu0
      %v1475 = vadd.f32 0.0, %v1474
      %v1476 = vpop.f32.mrb[0].mxu0
      %v1477 = vadd.f32 0.0, %v1476
      %v1478 = vpop.f32.mrb[0].mxu0
      %v1479 = vadd.f32 0.0, %v1478
      %1480 = vmatprep.mubr.bf16.mxu0 0
      %1481 = vmatmul.mubr.bf16.gmra.mrb[0].mxu0 %v1387
      %v1482 = vpop.f32.mrb[0].mxu0
      %v1483 = vadd.f32 0.0, %v1482
      %v1484 = vpop.f32.mrb[0].mxu0
      %v1485 = vadd.f32 0.0, %v1484
      %v1486 = vpop.f32.mrb[0].mxu0
      %v1487 = vadd.f32 0.0, %v1486
      %v1488 = vpop.f32.mrb[0].mxu0
      %v1489 = vadd.f32 0.0, %v1488
      %1490 = vmatprep.mubr.bf16.mxu0 0
      %1491 = vmatmul.mubr.bf16.gmra.mrb[0].mxu0 %v1390
      %v1492 = vpop.f32.mrb[0].mxu0
      %v1493 = vadd.f32 0.0, %v1492
      %v1494 = vpop.f32.mrb[0].mxu0
      %v1495 = vadd.f32 0.0, %v1494
      %v1496 = vpop.f32.mrb[0].mxu0
      %v1497 = vadd.f32 0.0, %v1496
      %v1498 = vpop.f32.mrb[0].mxu0
      %v1499 = vadd.f32 0.0, %v1498
      %1500 = vmatprep.mubr.bf16.mxu0 0
      %1501 = vmatmul.mubr.bf16.gmra.mrb[0].mxu0 %v1393
      %v1502 = vpop.f32.mrb[0].mxu0
      %v1503 = vadd.f32 0.0, %v1502
      %v1504 = vpop.f32.mrb[0].mxu0
      %v1505 = vadd.f32 0.0, %v1504
      %v1506 = vpop.f32.mrb[0].mxu0
      %v1507 = vadd.f32 0.0, %v1506
      %v1508 = vpop.f32.mrb[0].mxu0
      %v1509 = vadd.f32 0.0, %v1508
      %1510 = vmatprep.mubr.bf16.mxu0 0
      %1511 = vmatmul.mubr.bf16.gmra.mrb[0].mxu0 %v1396
      %v1512 = vpop.f32.mrb[0].mxu0
      %v1513 = vadd.f32 0.0, %v1512
      %v1514 = vpop.f32.mrb[0].mxu0
      %v1515 = vadd.f32 0.0, %v1514
      %v1516 = vpop.f32.mrb[0].mxu0
      %v1517 = vadd.f32 0.0, %v1516
      %v1518 = vpop.f32.mrb[0].mxu0
      %v1519 = vadd.f32 0.0, %v1518
      %1520 = vmatprep.mubr.bf16.mxu0 0
      %1521 = vmatmul.mubr.bf16.gmra.mrb[0].mxu0 %v1399
      %v1522 = vpop.f32.mrb[0].mxu0
      %v1523 = vadd.f32 0.0, %v1522
      %v1524 = vpop.f32.mrb[0].mxu0
      %v1525 = vadd.f32 0.0, %v1524
      %v1526 = vpop.f32.mrb[0].mxu0
      %v1527 = vadd.f32 0.0, %v1526
      %v1528 = vpop.f32.mrb[0].mxu0
      %v1529 = vadd.f32 0.0, %v1528
      %1530 = vmatprep.mubr.bf16.mxu0 0
      %1531 = vmatmul.mubr.bf16.gmra.mrb[0].mxu0 %v1402
      %v1532 = vpop.f32.mrb[0].mxu0
      %v1533 = vadd.f32 0.0, %v1532
      %v1534 = vpop.f32.mrb[0].mxu0
      %v1535 = vadd.f32 0.0, %v1534
      %v1536 = vpop.f32.mrb[0].mxu0
      %v1537 = vadd.f32 0.0, %v1536
      %v1538 = vpop.f32.mrb[0].mxu0
      %v1539 = vadd.f32 0.0, %v1538
      %1540 = vmatprep.mubr.bf16.mxu0 0
      %1541 = vmatmul.mubr.bf16.gmra.mrb[0].mxu0 %v1405
      %v1542 = vpop.f32.mrb[0].mxu0
      %v1543 = vadd.f32 0.0, %v1542
      %v1544 = vpop.f32.mrb[0].mxu0
      %v1545 = vadd.f32 0.0, %v1544
      %v1546 = vpop.f32.mrb[0].mxu0
      %v1547 = vadd.f32 0.0, %v1546
      %v1548 = vpop.f32.mrb[0].mxu0
      %v1549 = vadd.f32 0.0, %v1548
      %1550 = vmatprep.mubr.bf16.mxu0 0
      %1551 = vmatmul.mubr.bf16.gmra.mrb[0].mxu0 %v1408
      %v1552 = vpop.f32.mrb[0].mxu0
      %v1553 = vadd.f32 0.0, %v1552
      %v1554 = vpop.f32.mrb[0].mxu0
      %v1555 = vadd.f32 0.0, %v1554
      %v1556 = vpop.f32.mrb[0].mxu0
      %v1557 = vadd.f32 0.0, %v1556
      %v1558 = vpop.f32.mrb[0].mxu0
      %v1559 = vadd.f32 0.0, %v1558
      %1560 = vmatprep.mubr.bf16.mxu0 0
      %1561 = vmatmul.mubr.bf16.gmra.mrb[0].mxu0 %v1411
      %v1562 = vpop.f32.mrb[0].mxu0
      %v1563 = vadd.f32 0.0, %v1562
      %v1564 = vpop.f32.mrb[0].mxu0
      %v1565 = vadd.f32 0.0, %v1564
      %v1566 = vpop.f32.mrb[0].mxu0
      %v1567 = vadd.f32 0.0, %v1566
      %v1568 = vpop.f32.mrb[0].mxu0
      %v1569 = vadd.f32 0.0, %v1568
      %1570 = vmatprep.mubr.bf16.mxu0 0
      %1571 = vmatmul.mubr.bf16.gmra.mrb[0].mxu0 %v1414
      %v1572 = vpop.f32.mrb[0].mxu0
      %v1573 = vadd.f32 0.0, %v1572
      %v1574 = vpop.f32.mrb[0].mxu0
      %v1575 = vadd.f32 0.0, %v1574
      %v1576 = vpop.f32.mrb[0].mxu0
      %v1577 = vadd.f32 0.0, %v1576
      %v1578 = vpop.f32.mrb[0].mxu0
      %v1579 = vadd.f32 0.0, %v1578
      %1580 = vmatprep.mubr.bf16.mxu0 0
      %1581 = vmatmul.mubr.bf16.gmra.mrb[0].mxu0 %v1417
      %v1582 = vpop.f32.mrb[0].mxu0
      %v1583 = vadd.f32 0.0, %v1582
      %v1584 = vpop.f32.mrb[0].mxu0
      %v1585 = vadd.f32 0.0, %v1584
      %v1586 = vpop.f32.mrb[0].mxu0
      %v1587 = vadd.f32 0.0, %v1586
      %v1588 = vpop.f32.mrb[0].mxu0
      %v1589 = vadd.f32 0.0, %v1588
      %1590 = vmatprep.mubr.bf16.mxu0 0
      %1591 = vmatmul.mubr.bf16.gmra.mrb[0].mxu0 %v1420
      %v1592 = vpop.f32.mrb[0].mxu0
      %v1593 = vadd.f32 0.0, %v1592
      %v1594 = vpop.f32.mrb[0].mxu0
      %v1595 = vadd.f32 0.0, %v1594
      %v1596 = vpop.f32.mrb[0].mxu0
      %v1597 = vadd.f32 0.0, %v1596
      %v1598 = vpop.f32.mrb[0].mxu0
      %v1599 = vadd.f32 0.0, %v1598
      %1600 = vmatprep.mubr.bf16.mxu0 0
      %1601 = vmatmul.mubr.bf16.gmra.mrb[0].mxu0 %v1423
      %v1602 = vpop.f32.mrb[0].mxu0
      %v1603 = vadd.f32 0.0, %v1602
      %v1604 = vpop.f32.mrb[0].mxu0
      %v1605 = vadd.f32 0.0, %v1604
      %v1606 = vpop.f32.mrb[0].mxu0
      %v1607 = vadd.f32 0.0, %v1606
      %v1608 = vpop.f32.mrb[0].mxu0
      %v1609 = vadd.f32 0.0, %v1608
      %1610 = vmatprep.mubr.bf16.mxu0 0
      %1611 = vmatmul.mubr.bf16.gmra.mrb[0].mxu0 %v1426
      %v1612 = vpop.f32.mrb[0].mxu0
      %v1613 = vadd.f32 0.0, %v1612
      %v1614 = vpop.f32.mrb[0].mxu0
      %v1615 = vadd.f32 0.0, %v1614
      %v1616 = vpop.f32.mrb[0].mxu0
      %v1617 = vadd.f32 0.0, %v1616
      %v1618 = vpop.f32.mrb[0].mxu0
      %v1619 = vadd.f32 0.0, %v1618
      %1620 = vdwg.mxu0
      %v1621 = vmax.f32 %v1463, %v1473
      %v1622 = vmax.f32 %v1467, %v1477
      %v1623 = vmax.f32 %v1621, %v1483
      %v1624 = vmax.f32 %v1622, %v1487
      %v1625 = vmax.f32 %v1623, %v1493
      %v1626 = vmax.f32 %v1624, %v1497
      %v1627 = vmax.f32 %v1625, %v1503
      %v1628 = vmax.f32 %v1626, %v1507
      %v1629 = vmax.f32 %v1627, %v1513
      %v1630 = vmax.f32 %v1628, %v1517
      %v1631 = vmax.f32 %v1629, %v1523
      %v1632 = vmax.f32 %v1630, %v1527
      %v1633 = vmax.f32 %v1631, %v1533
      %v1634 = vmax.f32 %v1632, %v1537
      %v1635 = vmax.f32 %v1633, %v1543
      %v1636 = vmax.f32 %v1634, %v1547
      %v1637 = vmax.f32 %v1635, %v1553
      %v1638 = vmax.f32 %v1636, %v1557
      %v1639 = vmax.f32 %v1637, %v1563
      %v1640 = vmax.f32 %v1638, %v1567
      %v1641 = vmax.f32 %v1639, %v1573
      %v1642 = vmax.f32 %v1640, %v1577
      %v1643 = vmax.f32 %v1641, %v1583
      %v1644 = vmax.f32 %v1642, %v1587
      %v1645 = vmax.f32 %v1643, %v1593
      %v1646 = vmax.f32 %v1644, %v1597
      %v1647 = vmax.f32 %v1645, %v1603
      %v1648 = vmax.f32 %v1646, %v1607
      %v1649 = vmax.f32 %v1647, %v1613
      %v1650 = vmax.f32 %v1648, %v1617
      %v1651 = vmax.f32 %v1649, %v1650
      %v1652 = vrot.slane %v1651, 4
      %v1653 = vmax.f32 %v1651, %v1652
      %v1654 = vrot.slane %v1653, 2
      %v1655 = vmax.f32 %v1653, %v1654
      %v1656 = vrot.slane %v1655, 1
      %v1657 = vmax.f32 %v1655, %v1656
      %v1658 = vmax.f32 %v1465, %v1475
      %v1659 = vmax.f32 %v1469, %v1479
      %v1660 = vmax.f32 %v1658, %v1485
      %v1661 = vmax.f32 %v1659, %v1489
      %v1662 = vmax.f32 %v1660, %v1495
      %v1663 = vmax.f32 %v1661, %v1499
      %v1664 = vmax.f32 %v1662, %v1505
      %v1665 = vmax.f32 %v1663, %v1509
      %v1666 = vmax.f32 %v1664, %v1515
      %v1667 = vmax.f32 %v1665, %v1519
      %v1668 = vmax.f32 %v1666, %v1525
      %v1669 = vmax.f32 %v1667, %v1529
      %v1670 = vmax.f32 %v1668, %v1535
      %v1671 = vmax.f32 %v1669, %v1539
      %v1672 = vmax.f32 %v1670, %v1545
      %v1673 = vmax.f32 %v1671, %v1549
      %v1674 = vmax.f32 %v1672, %v1555
      %v1675 = vmax.f32 %v1673, %v1559
      %v1676 = vmax.f32 %v1674, %v1565
      %v1677 = vmax.f32 %v1675, %v1569
      %v1678 = vmax.f32 %v1676, %v1575
      %v1679 = vmax.f32 %v1677, %v1579
      %v1680 = vmax.f32 %v1678, %v1585
      %v1681 = vmax.f32 %v1679, %v1589
      %v1682 = vmax.f32 %v1680, %v1595
      %v1683 = vmax.f32 %v1681, %v1599
      %v1684 = vmax.f32 %v1682, %v1605
      %v1685 = vmax.f32 %v1683, %v1609
      %v1686 = vmax.f32 %v1684, %v1615
      %v1687 = vmax.f32 %v1685, %v1619
      %v1688 = vmax.f32 %v1686, %v1687
      %v1689 = vrot.slane %v1688, 4
      %v1690 = vmax.f32 %v1688, %v1689
      %v1691 = vrot.slane %v1690, 2
      %v1692 = vmax.f32 %v1690, %v1691
      %v1693 = vrot.slane %v1692, 1
      %v1694 = vmax.f32 %v1692, %v1693
      %v1695 = vsub.f32 %v1463, %v1657
      %v1696 = vsub.f32 %v1465, %v1694
      %v1697 = vsub.f32 %v1467, %v1657
      %v1698 = vsub.f32 %v1469, %v1694
      %v1699 = vsub.f32 %v1473, %v1657
      %v1700 = vsub.f32 %v1475, %v1694
      %v1701 = vsub.f32 %v1477, %v1657
      %v1702 = vsub.f32 %v1479, %v1694
      %v1703 = vsub.f32 %v1483, %v1657
      %v1704 = vsub.f32 %v1485, %v1694
      %v1705 = vsub.f32 %v1487, %v1657
      %v1706 = vsub.f32 %v1489, %v1694
      %v1707 = vsub.f32 %v1493, %v1657
      %v1708 = vsub.f32 %v1495, %v1694
      %v1709 = vsub.f32 %v1497, %v1657
      %v1710 = vsub.f32 %v1499, %v1694
      %v1711 = vsub.f32 %v1503, %v1657
      %v1712 = vsub.f32 %v1505, %v1694
      %v1713 = vsub.f32 %v1507, %v1657
      %v1714 = vsub.f32 %v1509, %v1694
      %v1715 = vsub.f32 %v1513, %v1657
      %v1716 = vsub.f32 %v1515, %v1694
      %v1717 = vsub.f32 %v1517, %v1657
      %v1718 = vsub.f32 %v1519, %v1694
      %v1719 = vsub.f32 %v1523, %v1657
      %v1720 = vsub.f32 %v1525, %v1694
      %v1721 = vsub.f32 %v1527, %v1657
      %v1722 = vsub.f32 %v1529, %v1694
      %v1723 = vsub.f32 %v1533, %v1657
      %v1724 = vsub.f32 %v1535, %v1694
      %v1725 = vsub.f32 %v1537, %v1657
      %v1726 = vsub.f32 %v1539, %v1694
      %v1727 = vsub.f32 %v1543, %v1657
      %v1728 = vsub.f32 %v1545, %v1694
      %v1729 = vsub.f32 %v1547, %v1657
      %v1730 = vsub.f32 %v1549, %v1694
      %v1731 = vsub.f32 %v1553, %v1657
      %v1732 = vsub.f32 %v1555, %v1694
      %v1733 = vsub.f32 %v1557, %v1657
      %v1734 = vsub.f32 %v1559, %v1694
      %v1735 = vsub.f32 %v1563, %v1657
      %v1736 = vsub.f32 %v1565, %v1694
      %v1737 = vsub.f32 %v1567, %v1657
      %v1738 = vsub.f32 %v1569, %v1694
      %v1739 = vsub.f32 %v1573, %v1657
      %v1740 = vsub.f32 %v1575, %v1694
      %v1741 = vsub.f32 %v1577, %v1657
      %v1742 = vsub.f32 %v1579, %v1694
      %v1743 = vsub.f32 %v1583, %v1657
      %v1744 = vsub.f32 %v1585, %v1694
      %v1745 = vsub.f32 %v1587, %v1657
      %v1746 = vsub.f32 %v1589, %v1694
      %v1747 = vsub.f32 %v1593, %v1657
      %v1748 = vsub.f32 %v1595, %v1694
      %v1749 = vsub.f32 %v1597, %v1657
      %v1750 = vsub.f32 %v1599, %v1694
      %v1751 = vsub.f32 %v1603, %v1657
      %v1752 = vsub.f32 %v1605, %v1694
      %v1753 = vsub.f32 %v1607, %v1657
      %v1754 = vsub.f32 %v1609, %v1694
      %v1755 = vsub.f32 %v1613, %v1657
      %v1756 = vsub.f32 %v1615, %v1694
      %v1757 = vsub.f32 %v1617, %v1657
      %v1758 = vsub.f32 %v1619, %v1694
      %v1759 = vmul.f32 %v1695, 1.442695
      %v1760 = vpow.pop %v1759
      %v1761 = vmul.f32 %v1696, 1.442695
      %v1762 = vpow.pop %v1761
      %v1763 = vmul.f32 %v1697, 1.442695
      %v1764 = vpow.pop %v1763
      %v1765 = vmul.f32 %v1698, 1.442695
      %v1766 = vpow.pop %v1765
      %v1767 = vmul.f32 %v1699, 1.442695
      %v1768 = vpow.pop %v1767
      %v1769 = vmul.f32 %v1700, 1.442695
      %v1770 = vpow.pop %v1769
      %v1771 = vmul.f32 %v1701, 1.442695
      %v1772 = vpow.pop %v1771
      %v1773 = vmul.f32 %v1702, 1.442695
      %v1774 = vpow.pop %v1773
      %v1775 = vmul.f32 %v1703, 1.442695
      %v1776 = vpow.pop %v1775
      %v1777 = vmul.f32 %v1704, 1.442695
      %v1778 = vpow.pop %v1777
      %v1779 = vmul.f32 %v1705, 1.442695
      %v1780 = vpow.pop %v1779
      %v1781 = vmul.f32 %v1706, 1.442695
      %v1782 = vpow.pop %v1781
      %v1783 = vmul.f32 %v1707, 1.442695
      %v1784 = vpow.pop %v1783
      %v1785 = vmul.f32 %v1708, 1.442695
      %v1786 = vpow.pop %v1785
      %v1787 = vmul.f32 %v1709, 1.442695
      %v1788 = vpow.pop %v1787
      %v1789 = vmul.f32 %v1710, 1.442695
      %v1790 = vpow.pop %v1789
      %v1791 = vmul.f32 %v1711, 1.442695
      %v1792 = vpow.pop %v1791
      %v1793 = vmul.f32 %v1712, 1.442695
      %v1794 = vpow.pop %v1793
      %v1795 = vmul.f32 %v1713, 1.442695
      %v1796 = vpow.pop %v1795
      %v1797 = vmul.f32 %v1714, 1.442695
      %v1798 = vpow.pop %v1797
      %v1799 = vmul.f32 %v1715, 1.442695
      %v1800 = vpow.pop %v1799
      %v1801 = vmul.f32 %v1716, 1.442695
      %v1802 = vpow.pop %v1801
      %v1803 = vmul.f32 %v1717, 1.442695
      %v1804 = vpow.pop %v1803
      %v1805 = vmul.f32 %v1718, 1.442695
      %v1806 = vpow.pop %v1805
      %v1807 = vmul.f32 %v1719, 1.442695
      %v1808 = vpow.pop %v1807
      %v1809 = vmul.f32 %v1720, 1.442695
      %v1810 = vpow.pop %v1809
      %v1811 = vmul.f32 %v1721, 1.442695
      %v1812 = vpow.pop %v1811
      %v1813 = vmul.f32 %v1722, 1.442695
      %v1814 = vpow.pop %v1813
      %v1815 = vmul.f32 %v1723, 1.442695
      %v1816 = vpow.pop %v1815
      %v1817 = vmul.f32 %v1724, 1.442695
      %v1818 = vpow.pop %v1817
      %v1819 = vmul.f32 %v1725, 1.442695
      %v1820 = vpow.pop %v1819
      %v1821 = vmul.f32 %v1726, 1.442695
      %v1822 = vpow.pop %v1821
      %v1823 = vmul.f32 %v1727, 1.442695
      %v1824 = vpow.pop %v1823
      %v1825 = vmul.f32 %v1728, 1.442695
      %v1826 = vpow.pop %v1825
      %v1827 = vmul.f32 %v1729, 1.442695
      %v1828 = vpow.pop %v1827
      %v1829 = vmul.f32 %v1730, 1.442695
      %v1830 = vpow.pop %v1829
      %v1831 = vmul.f32 %v1731, 1.442695
      %v1832 = vpow.pop %v1831
      %v1833 = vmul.f32 %v1732, 1.442695
      %v1834 = vpow.pop %v1833
      %v1835 = vmul.f32 %v1733, 1.442695
      %v1836 = vpow.pop %v1835
      %v1837 = vmul.f32 %v1734, 1.442695
      %v1838 = vpow.pop %v1837
      %v1839 = vmul.f32 %v1735, 1.442695
      %v1840 = vpow.pop %v1839
      %v1841 = vmul.f32 %v1736, 1.442695
      %v1842 = vpow.pop %v1841
      %v1843 = vmul.f32 %v1737, 1.442695
      %v1844 = vpow.pop %v1843
      %v1845 = vmul.f32 %v1738, 1.442695
      %v1846 = vpow.pop %v1845
      %v1847 = vmul.f32 %v1739, 1.442695
      %v1848 = vpow.pop %v1847
      %v1849 = vmul.f32 %v1740, 1.442695
      %v1850 = vpow.pop %v1849
      %v1851 = vmul.f32 %v1741, 1.442695
      %v1852 = vpow.pop %v1851
      %v1853 = vmul.f32 %v1742, 1.442695
      %v1854 = vpow.pop %v1853
      %v1855 = vmul.f32 %v1743, 1.442695
      %v1856 = vpow.pop %v1855
      %v1857 = vmul.f32 %v1744, 1.442695
      %v1858 = vpow.pop %v1857
      %v1859 = vmul.f32 %v1745, 1.442695
      %v1860 = vpow.pop %v1859
      %v1861 = vmul.f32 %v1746, 1.442695
      %v1862 = vpow.pop %v1861
      %v1863 = vmul.f32 %v1747, 1.442695
      %v1864 = vpow.pop %v1863
      %v1865 = vmul.f32 %v1748, 1.442695
      %v1866 = vpow.pop %v1865
      %v1867 = vmul.f32 %v1749, 1.442695
      %v1868 = vpow.pop %v1867
      %v1869 = vmul.f32 %v1750, 1.442695
      %v1870 = vpow.pop %v1869
      %v1871 = vmul.f32 %v1751, 1.442695
      %v1872 = vpow.pop %v1871
      %v1873 = vmul.f32 %v1752, 1.442695
      %v1874 = vpow.pop %v1873
      %v1875 = vmul.f32 %v1753, 1.442695
      %v1876 = vpow.pop %v1875
      %v1877 = vmul.f32 %v1754, 1.442695
      %v1878 = vpow.pop %v1877
      %v1879 = vmul.f32 %v1755, 1.442695
      %v1880 = vpow.pop %v1879
      %v1881 = vmul.f32 %v1756, 1.442695
      %v1882 = vpow.pop %v1881
      %v1883 = vmul.f32 %v1757, 1.442695
      %v1884 = vpow.pop %v1883
      %v1885 = vmul.f32 %v1758, 1.442695
      %v1886 = vpow.pop %v1885
      %v1887 = vadd.f32 %v1760, %v1764
      %v1888 = vadd.f32 %v1887, %v1768
      %v1889 = vadd.f32 %v1888, %v1772
      %v1890 = vadd.f32 %v1889, %v1776
      %v1891 = vadd.f32 %v1890, %v1780
      %v1892 = vadd.f32 %v1891, %v1784
      %v1893 = vadd.f32 %v1892, %v1788
      %v1894 = vadd.f32 %v1893, %v1792
      %v1895 = vadd.f32 %v1894, %v1796
      %v1896 = vadd.f32 %v1895, %v1800
      %v1897 = vadd.f32 %v1896, %v1804
      %v1898 = vadd.f32 %v1897, %v1808
      %v1899 = vadd.f32 %v1898, %v1812
      %v1900 = vadd.f32 %v1899, %v1816
      %v1901 = vadd.f32 %v1900, %v1820
      %v1902 = vadd.f32 %v1901, %v1824
      %v1903 = vadd.f32 %v1902, %v1828
      %v1904 = vadd.f32 %v1903, %v1832
      %v1905 = vadd.f32 %v1904, %v1836
      %v1906 = vadd.f32 %v1905, %v1840
      %v1907 = vadd.f32 %v1906, %v1844
      %v1908 = vadd.f32 %v1907, %v1848
      %v1909 = vadd.f32 %v1908, %v1852
      %v1910 = vadd.f32 %v1909, %v1856
      %v1911 = vadd.f32 %v1910, %v1860
      %v1912 = vadd.f32 %v1911, %v1864
      %v1913 = vadd.f32 %v1912, %v1868
      %v1914 = vadd.f32 %v1913, %v1872
      %v1915 = vadd.f32 %v1914, %v1876
      %v1916 = vadd.f32 %v1915, %v1880
      %v1917 = vadd.f32 %v1916, %v1884
      %v1918 = vrot.slane %v1917, 4
      %v1919 = vadd.f32 %v1917, %v1918
      %v1920 = vrot.slane %v1919, 2
      %v1921 = vadd.f32 %v1919, %v1920
      %v1922 = vrot.slane %v1921, 1
      %v1923 = vadd.f32 %v1921, %v1922
      %v1924 = vadd.f32 %v1762, %v1766
      %v1925 = vadd.f32 %v1924, %v1770
      %v1926 = vadd.f32 %v1925, %v1774
      %v1927 = vadd.f32 %v1926, %v1778
      %v1928 = vadd.f32 %v1927, %v1782
      %v1929 = vadd.f32 %v1928, %v1786
      %v1930 = vadd.f32 %v1929, %v1790
      %v1931 = vadd.f32 %v1930, %v1794
      %v1932 = vadd.f32 %v1931, %v1798
      %v1933 = vadd.f32 %v1932, %v1802
      %v1934 = vadd.f32 %v1933, %v1806
      %v1935 = vadd.f32 %v1934, %v1810
      %v1936 = vadd.f32 %v1935, %v1814
      %v1937 = vadd.f32 %v1936, %v1818
      %v1938 = vadd.f32 %v1937, %v1822
      %v1939 = vadd.f32 %v1938, %v1826
      %v1940 = vadd.f32 %v1939, %v1830
      %v1941 = vadd.f32 %v1940, %v1834
      %v1942 = vadd.f32 %v1941, %v1838
      %v1943 = vadd.f32 %v1942, %v1842
      %v1944 = vadd.f32 %v1943, %v1846
      %v1945 = vadd.f32 %v1944, %v1850
      %v1946 = vadd.f32 %v1945, %v1854
      %v1947 = vadd.f32 %v1946, %v1858
      %v1948 = vadd.f32 %v1947, %v1862
      %v1949 = vadd.f32 %v1948, %v1866
      %v1950 = vadd.f32 %v1949, %v1870
      %v1951 = vadd.f32 %v1950, %v1874
      %v1952 = vadd.f32 %v1951, %v1878
      %v1953 = vadd.f32 %v1952, %v1882
      %v1954 = vadd.f32 %v1953, %v1886
      %v1955 = vrot.slane %v1954, 4
      %v1956 = vadd.f32 %v1954, %v1955
      %v1957 = vrot.slane %v1956, 2
      %v1958 = vadd.f32 %v1956, %v1957
      %v1959 = vrot.slane %v1958, 1
      %v1960 = vadd.f32 %v1958, %v1959
      %v1961 = vrcp.pop %v1923
      %v1962 = vrcp.pop %v1960
      %v1963 = vmul.f32 %v1760, %v1961
      %v1964 = vmul.f32 %v1762, %v1962
      %v1965 = vmul.f32 %v1764, %v1961
      %v1966 = vmul.f32 %v1766, %v1962
      %v1967 = vmul.f32 %v1768, %v1961
      %v1968 = vmul.f32 %v1770, %v1962
      %v1969 = vmul.f32 %v1772, %v1961
      %v1970 = vmul.f32 %v1774, %v1962
      %v1971 = vmul.f32 %v1776, %v1961
      %v1972 = vmul.f32 %v1778, %v1962
      %v1973 = vmul.f32 %v1780, %v1961
      %v1974 = vmul.f32 %v1782, %v1962
      %v1975 = vmul.f32 %v1784, %v1961
      %v1976 = vmul.f32 %v1786, %v1962
      %v1977 = vmul.f32 %v1788, %v1961
      %v1978 = vmul.f32 %v1790, %v1962
      %v1979 = vmul.f32 %v1792, %v1961
      %v1980 = vmul.f32 %v1794, %v1962
      %v1981 = vmul.f32 %v1796, %v1961
      %v1982 = vmul.f32 %v1798, %v1962
      %v1983 = vmul.f32 %v1800, %v1961
      %v1984 = vmul.f32 %v1802, %v1962
      %v1985 = vmul.f32 %v1804, %v1961
      %v1986 = vmul.f32 %v1806, %v1962
      %v1987 = vmul.f32 %v1808, %v1961
      %v1988 = vmul.f32 %v1810, %v1962
      %v1989 = vmul.f32 %v1812, %v1961
      %v1990 = vmul.f32 %v1814, %v1962
      %v1991 = vmul.f32 %v1816, %v1961
      %v1992 = vmul.f32 %v1818, %v1962
      %v1993 = vmul.f32 %v1820, %v1961
      %v1994 = vmul.f32 %v1822, %v1962
      %v1995 = vmul.f32 %v1824, %v1961
      %v1996 = vmul.f32 %v1826, %v1962
      %v1997 = vmul.f32 %v1828, %v1961
      %v1998 = vmul.f32 %v1830, %v1962
      %v1999 = vmul.f32 %v1832, %v1961
      %v2000 = vmul.f32 %v1834, %v1962
      %v2001 = vmul.f32 %v1836, %v1961
      %v2002 = vmul.f32 %v1838, %v1962
      %v2003 = vmul.f32 %v1840, %v1961
      %v2004 = vmul.f32 %v1842, %v1962
      %v2005 = vmul.f32 %v1844, %v1961
      %v2006 = vmul.f32 %v1846, %v1962
      %v2007 = vmul.f32 %v1848, %v1961
      %v2008 = vmul.f32 %v1850, %v1962
      %v2009 = vmul.f32 %v1852, %v1961
      %v2010 = vmul.f32 %v1854, %v1962
      %v2011 = vmul.f32 %v1856, %v1961
      %v2012 = vmul.f32 %v1858, %v1962
      %v2013 = vmul.f32 %v1860, %v1961
      %v2014 = vmul.f32 %v1862, %v1962
      %v2015 = vmul.f32 %v1864, %v1961
      %v2016 = vmul.f32 %v1866, %v1962
      %v2017 = vmul.f32 %v1868, %v1961
      %v2018 = vmul.f32 %v1870, %v1962
      %v2019 = vmul.f32 %v1872, %v1961
      %v2020 = vmul.f32 %v1874, %v1962
      %v2021 = vmul.f32 %v1876, %v1961
      %v2022 = vmul.f32 %v1878, %v1962
      %v2023 = vmul.f32 %v1880, %v1961
      %v2024 = vmul.f32 %v1882, %v1962
      %v2025 = vmul.f32 %v1884, %v1961
      %v2026 = vmul.f32 %v1886, %v1962
      %v2027 = vpack.c.bf16 %v1965, %v1963
      %v2028 = vpack.c.bf16 %v1966, %v1964
      %v2029 = vpack.c.bf16 %v1969, %v1967
      %v2030 = vpack.c.bf16 %v1970, %v1968
      %v2031 = vpack.c.bf16 %v1973, %v1971
      %v2032 = vpack.c.bf16 %v1974, %v1972
      %v2033 = vpack.c.bf16 %v1977, %v1975
      %v2034 = vpack.c.bf16 %v1978, %v1976
      %v2035 = vpack.c.bf16 %v1981, %v1979
      %v2036 = vpack.c.bf16 %v1982, %v1980
      %v2037 = vpack.c.bf16 %v1985, %v1983
      %v2038 = vpack.c.bf16 %v1986, %v1984
      %v2039 = vpack.c.bf16 %v1989, %v1987
      %v2040 = vpack.c.bf16 %v1990, %v1988
      %v2041 = vpack.c.bf16 %v1993, %v1991
      %v2042 = vpack.c.bf16 %v1994, %v1992
      %v2043 = vpack.c.bf16 %v1997, %v1995
      %v2044 = vpack.c.bf16 %v1998, %v1996
      %v2045 = vpack.c.bf16 %v2001, %v1999
      %v2046 = vpack.c.bf16 %v2002, %v2000
      %v2047 = vpack.c.bf16 %v2005, %v2003
      %v2048 = vpack.c.bf16 %v2006, %v2004
      %v2049 = vpack.c.bf16 %v2009, %v2007
      %v2050 = vpack.c.bf16 %v2010, %v2008
      %v2051 = vpack.c.bf16 %v2013, %v2011
      %v2052 = vpack.c.bf16 %v2014, %v2012
      %v2053 = vpack.c.bf16 %v2017, %v2015
      %v2054 = vpack.c.bf16 %v2018, %v2016
      %v2055 = vpack.c.bf16 %v2021, %v2019
      %v2056 = vpack.c.bf16 %v2022, %v2020
      %v2057 = vpack.c.bf16 %v2025, %v2023
      %v2058 = vpack.c.bf16 %v2026, %v2024
      %v2059 = vsub.f32 %v1259, %v1267
      %v2060 = vsub.f32 %v1260, %v1268
      %v2061 = vsub.f32 %v1261, %v1269
      %v2062 = vsub.f32 %v1262, %v1270
      %v2063 = vsub.f32 %v1263, %v1271
      %v2064 = vsub.f32 %v1264, %v1272
      %v2065 = vsub.f32 %v1265, %v1273
      %v2066 = vsub.f32 %v1266, %v1274
      %v2067 = vmax.f32 %v2059, %v2063
      %v2068 = vmax.f32 %v2061, %v2065
      %v2069 = vmax.f32 %v2067, %v2068
      %v2070 = vrot.slane %v2069, 4
      %v2071 = vmax.f32 %v2069, %v2070
      %v2072 = vrot.slane %v2071, 2
      %v2073 = vmax.f32 %v2071, %v2072
      %v2074 = vrot.slane %v2073, 1
      %v2075 = vmax.f32 %v2073, %v2074
      %v2076 = vmax.f32 %v2060, %v2064
      %v2077 = vmax.f32 %v2062, %v2066
      %v2078 = vmax.f32 %v2076, %v2077
      %v2079 = vrot.slane %v2078, 4
      %v2080 = vmax.f32 %v2078, %v2079
      %v2081 = vrot.slane %v2080, 2
      %v2082 = vmax.f32 %v2080, %v2081
      %v2083 = vrot.slane %v2082, 1
      %v2084 = vmax.f32 %v2082, %v2083
      %v2085 = vsub.f32 %v2059, %v2075
      %v2086 = vsub.f32 %v2060, %v2084
      %v2087 = vsub.f32 %v2061, %v2075
      %v2088 = vsub.f32 %v2062, %v2084
      %v2089 = vsub.f32 %v2063, %v2075
      %v2090 = vsub.f32 %v2064, %v2084
      %v2091 = vsub.f32 %v2065, %v2075
      %v2092 = vsub.f32 %v2066, %v2084
      %v2093 = vmul.f32 %v2085, 1.442695
      %v2094 = vpow.pop %v2093
      %v2095 = vmul.f32 %v2086, 1.442695
      %v2096 = vpow.pop %v2095
      %v2097 = vmul.f32 %v2087, 1.442695
      %v2098 = vpow.pop %v2097
      %v2099 = vmul.f32 %v2088, 1.442695
      %v2100 = vpow.pop %v2099
      %v2101 = vmul.f32 %v2089, 1.442695
      %v2102 = vpow.pop %v2101
      %v2103 = vmul.f32 %v2090, 1.442695
      %v2104 = vpow.pop %v2103
      %v2105 = vmul.f32 %v2091, 1.442695
      %v2106 = vpow.pop %v2105
      %v2107 = vmul.f32 %v2092, 1.442695
      %v2108 = vpow.pop %v2107
      %v2109 = vadd.f32 %v2094, %v2098
      %v2110 = vadd.f32 %v2109, %v2102
      %v2111 = vadd.f32 %v2110, %v2106
      %v2112 = vrot.slane %v2111, 4
      %v2113 = vadd.f32 %v2111, %v2112
      %v2114 = vrot.slane %v2113, 2
      %v2115 = vadd.f32 %v2113, %v2114
      %v2116 = vrot.slane %v2115, 1
      %v2117 = vadd.f32 %v2115, %v2116
      %v2118 = vadd.f32 %v2096, %v2100
      %v2119 = vadd.f32 %v2118, %v2104
      %v2120 = vadd.f32 %v2119, %v2108
      %v2121 = vrot.slane %v2120, 4
      %v2122 = vadd.f32 %v2120, %v2121
      %v2123 = vrot.slane %v2122, 2
      %v2124 = vadd.f32 %v2122, %v2123
      %v2125 = vrot.slane %v2124, 1
      %v2126 = vadd.f32 %v2124, %v2125
      %v2127 = vrcp.pop %v2117
      %v2128 = vrcp.pop %v2126
      %v2129 = vmul.f32 %v2094, %v2127
      %v2130 = vmul.f32 %v2096, %v2128
      %v2131 = vmul.f32 %v2098, %v2127
      %v2132 = vmul.f32 %v2100, %v2128
      %v2133 = vmul.f32 %v2102, %v2127
      %v2134 = vmul.f32 %v2104, %v2128
      %v2135 = vmul.f32 %v2106, %v2127
      %v2136 = vmul.f32 %v2108, %v2128
      %v2137 = vmul.f32 %v2129, %v1267
      %v2138 = vmul.f32 %v2130, %v1268
      %v2139 = vmul.f32 %v2131, %v1269
      %v2140 = vmul.f32 %v2132, %v1270
      %v2141 = vmul.f32 %v2133, %v1271
      %v2142 = vmul.f32 %v2134, %v1272
      %v2143 = vmul.f32 %v2135, %v1273
      %v2144 = vmul.f32 %v2136, %v1274
      %2145 = vst [vmem:[%s257] sm:$0xff] %v1259
      %2146 = vst [vmem:[%s257 + $0x8] sm:$0xff] %v1260
      %2147 = vst [vmem:[%s257 + $0x10] sm:$0xff] %v1261
      %2148 = vst [vmem:[%s257 + $0x18] sm:$0xff] %v1262
      %2149 = vst [vmem:[%s257 + $0x20] sm:$0xff] %v1263
      %2150 = vst [vmem:[%s257 + $0x28] sm:$0xff] %v1264
      %2151 = vst [vmem:[%s257 + $0x30] sm:$0xff] %v1265
      %2152 = vst [vmem:[%s257 + $0x38] sm:$0xff] %v1266
      %2153 = vmatprep.subr.bf16.mxu0 %v2028
      %2154 = vmatpush1.bf16.msra.mxu0 %v2027
      %2155 = vmatprep.subr.bf16.mxu0 %v2030
      %2156 = vmatpush1.bf16.msra.mxu0 %v2029
      %2157 = vmatprep.subr.bf16.mxu0 %v2032
      %2158 = vmatpush1.bf16.msra.mxu0 %v2031
      %2159 = vmatprep.subr.bf16.mxu0 %v2034
      %2160 = vmatpush1.bf16.msra.mxu0 %v2033
      %2161 = vmatprep.subr.bf16.mxu0 %v2036
      %2162 = vmatpush1.bf16.msra.mxu0 %v2035
      %2163 = vmatprep.subr.bf16.mxu0 %v2038
      %2164 = vmatpush1.bf16.msra.mxu0 %v2037
      %2165 = vmatprep.subr.bf16.mxu0 %v2040
      %2166 = vmatpush1.bf16.msra.mxu0 %v2039
      %2167 = vmatprep.subr.bf16.mxu0 %v2042
      %2168 = vmatpush1.bf16.msra.mxu0 %v2041
      %2169 = vmatprep.subr.bf16.mxu0 %v2044
      %2170 = vmatpush1.bf16.msra.mxu0 %v2043
      %2171 = vmatprep.subr.bf16.mxu0 %v2046
      %2172 = vmatpush1.bf16.msra.mxu0 %v2045
      %2173 = vmatprep.subr.bf16.mxu0 %v2048
      %2174 = vmatpush1.bf16.msra.mxu0 %v2047
      %2175 = vmatprep.subr.bf16.mxu0 %v2050
      %2176 = vmatpush1.bf16.msra.mxu0 %v2049
      %2177 = vmatprep.subr.bf16.mxu0 %v2052
      %2178 = vmatpush1.bf16.msra.mxu0 %v2051
      %2179 = vmatprep.subr.bf16.mxu0 %v2054
      %2180 = vmatpush1.bf16.msra.mxu0 %v2053
      %2181 = vmatprep.subr.bf16.mxu0 %v2056
      %2182 = vmatpush1.bf16.msra.mxu0 %v2055
      %2183 = vmatprep.subr.bf16.mxu0 %v2058
      %2184 = vmatpush1.bf16.msra.mxu0 %v2057
      %2185 = vmatprep.mubr.bf16.mxu0 %v1288
      %2186 = vmatmul.mubr.bf16.gmra.mrb[0].mxu0 %v1287
      %v2187 = vpop.f32.mrb[0].mxu0
      %v2188 = vadd.f32 %v2137, %v2187
      %v2189 = vpop.f32.mrb[0].mxu0
      %v2190 = vadd.f32 %v2138, %v2189
      %v2191 = vpop.f32.mrb[0].mxu0
      %v2192 = vadd.f32 %v2139, %v2191
      %v2193 = vpop.f32.mrb[0].mxu0
      %v2194 = vadd.f32 %v2140, %v2193
      %2195 = vmatprep.mubr.bf16.mxu0 %v1290
      %2196 = vmatmul.mubr.bf16.gmra.mrb[0].mxu0 %v1289
      %v2197 = vpop.f32.mrb[0].mxu0
      %v2198 = vadd.f32 %v2141, %v2197
      %v2199 = vpop.f32.mrb[0].mxu0
      %v2200 = vadd.f32 %v2142, %v2199
      %v2201 = vpop.f32.mrb[0].mxu0
      %v2202 = vadd.f32 %v2143, %v2201
      %v2203 = vpop.f32.mrb[0].mxu0
      %v2204 = vadd.f32 %v2144, %v2203
      %2205 = vdwg.mxu0
      %2206 = vst [vmem:[%s257 + $0x40] sm:$0xff] %v2188
      %2207 = vst [vmem:[%s257 + $0x48] sm:$0xff] %v2190
      %2208 = vst [vmem:[%s257 + $0x50] sm:$0xff] %v2192
      %2209 = vst [vmem:[%s257 + $0x58] sm:$0xff] %v2194
      %2210 = vst [vmem:[%s257 + $0x60] sm:$0xff] %v2198
      %2211 = vst [vmem:[%s257 + $0x68] sm:$0xff] %v2200
      %2212 = vst [vmem:[%s257 + $0x70] sm:$0xff] %v2202
      %2213 = vst [vmem:[%s257 + $0x78] sm:$0xff] %v2204
      %p2214 = scmp.lt.s32.totalorder %s17, 1
      %s2215 = scalar_select %p2214, %s17, 1
      %s2216 = smul.addr %s2215, 16
      %s2217 = smul.addr %s2216, 8
      %s2218 = scalar_lea.vmem %s4, %s2217
      %p2219 = scmp.lt.s32.totalorder %s17, 1
      %s2220 = scalar_select %p2219, %s17, 1
      %s2221 = smul.addr %s2220, 16
      %s2222 = smul.addr %s2221, 8
      %s2223 = scalar_lea.vmem %s5, %s2222
      // Predicated region
      $region37: #{back_layers.1} parent=35 // pred_check
        %p2224 = pneg %p129
      $region38: #{back_layers.1} parent=35 // pred_check_branch
        %2226 = sbr.rel (%p2224) target = $region40
      $region39: #{back_layers.1} parent=35 // pred_region
        _
      $region40: #{back_layers.1} parent=35 // pred_fallthru
        _
      // Predicated region
      $region41: #{back_layers.1} parent=35 // pred_check
        %p2227 = pneg %p155
      $region42: #{back_layers.1} parent=35 // pred_check_branch
        %2229 = sbr.rel (%p2227) target = $region44
      $region43: #{back_layers.1} parent=35 // pred_region
        _
      $region44: #{back_layers.1} parent=35 // pred_fallthru
        _
    $region36: #{back_layers.1} parent=5 // pred_fallthru
      _
    %p2230 = scmp.le.s32.totalorder 2, %s12
    // Predicated region
    $region45: #{back_layers.1} parent=5 // pred_check
      %p2231 = pneg %p2230
    $region46: #{back_layers.1} parent=5 // pred_check_branch
      %2233 = sbr.rel (%p2231) target = $region48
    $region47: #{back_layers.1} parent=5 // pred_region
      %s2234 = ssub.s32 %s12, 2
      // Predicated region
      $region49: #{back_layers.1} parent=47 // pred_check
        %p2235 = pneg %p135
      $region50: #{back_layers.1} parent=47 // pred_check_branch
        %2237 = sbr.rel (%p2235) target = $region52
      $region51: #{back_layers.1} parent=47 // pred_region
        %p2238 = scmp.lt.s32.totalorder %s18, 1
        %s2239 = scalar_select %p2238, %s18, 1
        %s2240 = smul.addr %s2239, 16
        %s2241 = smul.addr %s2240, 8
        %s2242 = scalar_lea.vmem %s4, %s2241
      $region52: #{back_layers.1} parent=47 // pred_fallthru
        _
      // Predicated region
      $region53: #{back_layers.1} parent=47 // pred_check
        %p2243 = pneg %p161
      $region54: #{back_layers.1} parent=47 // pred_check_branch
        %2245 = sbr.rel (%p2243) target = $region56
      $region55: #{back_layers.1} parent=47 // pred_region
        %p2246 = scmp.lt.s32.totalorder %s18, 1
        %s2247 = scalar_select %p2246, %s18, 1
        %s2248 = smul.addr %s2247, 16
        %s2249 = smul.addr %s2248, 8
        %s2250 = scalar_lea.vmem %s5, %s2249
      $region56: #{back_layers.1} parent=47 // pred_fallthru
        _
    $region48: #{back_layers.1} parent=5 // pred_fallthru
      _
  $region6: #{back_layers.1} parent=0 // loop_footer
    %s16 = sadd.s32 1, %s12
  $region7: #{back_layers.1} parent=0 // loop_footer_branch
    %11 = sbr.rel target = $region3
  $region8: #{back_layers.1} parent=0 // loop_exit
    _

</llo_original>
